<compile_context>
chip_gen: v6e
topology: v6e:2x2x1
jax: 0.10.0
libtpu: 0.0.40
codegen_flags: <defaults>
</compile_context>

<pallas_src>
import numpy as np

import jax
import jax.numpy as jnp
from jax.experimental import pallas as pl
from jax.experimental.pallas import tpu as pltpu


# ---------------------------------------------------------------------------
# Fused Pallas kernel: whole QTRegressor forward for the whole (small) batch.
# ---------------------------------------------------------------------------
def _qt_fused_kernel(x_ref, sel_ref, pool_ref, w1_ref, b1_ref, w2_ref, b2_ref,
                     w3_ref, b3_ref, wl_ref, b4_ref, wh_ref, bh_ref, o_ref):
    f32, bf16 = jnp.float32, jnp.bfloat16
    F = w1_ref.shape[1]                 # mid channels
    m2 = pool_ref.shape[1]              # Nb * Ho * Wo (conv-output rows)
    n_taps = sel_ref.shape[0] // m2     # 9

    x = x_ref[...]                                                  # (Nb*H*W, F) bf16

    # pipe[0]: 1x1 conv + folded BN1 + ReLU                          -- MXU push 1
    h1 = jnp.dot(x, w1_ref[...], preferred_element_type=f32) + b1_ref[...]
    h1 = jnp.maximum(h1, 0.0).astype(bf16)                          # (Nb*H*W, F)

    # One stacked selector matmul gathers all 9 taps of h1 (im2col for the
    # 3x3 stride-2 conv) AND the stride-2 subsample of x for the 1x1 shortcut
    # (its spatial pattern equals the center tap).                   -- MXU push 2
    both = jnp.concatenate([h1, x], axis=-1)                        # (Nb*H*W, 2F)
    d = jnp.dot(sel_ref[...], both, preferred_element_type=f32)     # (9*M2, 2F)
    g = d[:, :F].astype(bf16)                                       # gathered h1, tap-major rows
    c0 = (n_taps // 2) * m2
    xs = d[c0:c0 + m2, F:2 * F].astype(bf16)                        # x[:, ::2, ::2], rows (b, o)

    # pipe[1]: all 9 per-tap channel transforms in ONE matmul; the tap-sum is
    # the sum of the 9 diagonal (M2, F) blocks of the (9*M2, 9F) result
    # (static slices + VPU adds, no relayout).                       -- MXU push 3
    e = jnp.dot(g, w2_ref[...], preferred_element_type=f32)         # (9*M2, 9F)
    acc = e[0:m2, 0:F]
    for t in range(1, n_taps):
        acc = acc + e[t * m2:(t + 1) * m2, t * F:(t + 1) * F]
    h2 = jnp.maximum(acc + b2_ref[...], 0.0).astype(bf16)           # (M2, F)

    # pipe[2] 1x1 conv + stride-2 shortcut fused into one matmul (the residual
    # add happens inside the contraction), + BN3 shift + ReLU.       -- MXU push 4
    y = jnp.dot(jnp.concatenate([h2, xs], axis=-1), w3_ref[...],
                preferred_element_type=f32) + b3_ref[...]
    y = jnp.maximum(y, 0.0).astype(bf16)                            # (M2, 2F)

    # AdaptiveAvgPool2d(1) as a constant block-diagonal averaging matmul, then
    # Linear(2F,2F) with the BN4 scale folded, BN4 shift, ReLU.  -- MXU pushes 5,6
    pooled = jnp.dot(pool_ref[...], y, preferred_element_type=f32).astype(bf16)  # (Nb, 2F)
    feat = jnp.dot(pooled, wl_ref[...], preferred_element_type=f32) + b4_ref[...]
    feat = jnp.maximum(feat, 0.0).astype(bf16)                      # (Nb, 2F)

    # Merged Q|T2d head, zero-padded to a lane-dense 128-wide slab.  -- MXU push 7
    out = jnp.dot(feat, wh_ref[...], preferred_element_type=f32) + bh_ref[...]
    o_ref[...] = out.astype(o_ref.dtype)                            # (Nb, 128) store


# ---------------------------------------------------------------------------
# Trace-time helpers
# ---------------------------------------------------------------------------
def fold_bn(gamma, beta, mean, var, eps):
    scale = gamma / jnp.sqrt(var + eps)
    shift = beta - mean * scale
    return scale, shift


def _build_selectors(nb, H, W, ksize=3, stride=2, pad=1):
    """Batched 0/1 gather matrix for the 3x3 stride-2 pad-1 conv.

    Row (t*nb*Ho*Wo + b*Ho*Wo + o) has a single 1 at column
    (b*H*W + input_index(o, t)), or is all-zero when tap t falls in the zero
    padding, so `sel @ flat(nb*H*W, C)` stacks all 9 gathered taps
    (tap-major, batch/output-minor) in one MXU push.
    """
    Ho = (H + 2 * pad - ksize) // stride + 1
    Wo = (W + 2 * pad - ksize) // stride + 1
    howo = Ho * Wo
    sel = np.zeros((ksize * ksize * nb * howo, nb * H * W), np.float32)
    for t in range(ksize * ksize):
        kh, kw = t // ksize, t % ksize
        for b in range(nb):
            for ho in range(Ho):
                r = stride * ho + kh - pad
                if not (0 <= r < H):
                    continue
                for wo in range(Wo):
                    c = stride * wo + kw - pad
                    if 0 <= c < W:
                        sel[t * nb * howo + b * howo + ho * Wo + wo,
                            b * H * W + r * W + c] = 1.0
    return sel, howo


def init_params(key, filters=32, num_cluster=1):
    F, F2 = filters, 2 * filters
    ks = jax.random.split(key, 13)
    nrm = lambda k, shp, std=0.05: std * jax.random.normal(k, shp, dtype=jnp.float32)

    def bn(k, c):
        return (
            1.0 + 0.1 * jax.random.normal(jax.random.fold_in(k, 0), (c,), jnp.float32),           # gamma
            0.1 * jax.random.normal(jax.random.fold_in(k, 1), (c,), jnp.float32),                 # beta
            0.1 * jax.random.normal(jax.random.fold_in(k, 2), (c,), jnp.float32),                 # running_mean
            1.0 + 0.1 * jnp.abs(jax.random.normal(jax.random.fold_in(k, 3), (c,), jnp.float32)),  # running_var
        )

    return {
        "w_conv1": nrm(ks[0], (F, F)),            # PRNResBlock pipe[0]: 1x1 conv F->F   (cin, cout)
        "bn1": bn(ks[1], F),
        "w_conv2": nrm(ks[2], (3, 3, F, F)),      # pipe[1]: 3x3 stride-2 conv (kh, kw, cin, cout)
        "bn2": bn(ks[3], F),
        "w_conv3": nrm(ks[4], (F, F2)),           # pipe[2]: 1x1 conv F->2F
        "w_short": nrm(ks[5], (F, F2)),           # shortcut: 1x1 stride-2 conv F->2F
        "bn3": bn(ks[6], F2),                     # BN_AC after residual add
        "w_lin": nrm(ks[7], (F2, F2)),            # Linear(2F, 2F, bias=False)  (in, out)
        "bn4": bn(ks[8], F2),                     # BatchNorm1d(2F)
        "w_q": nrm(ks[9], (F2, num_cluster * 4)),
        "b_q": nrm(ks[10], (num_cluster * 4,)),
        "w_t": nrm(ks[11], (F2, num_cluster * 2)),
        "b_t": nrm(ks[12], (num_cluster * 2,)),
    }


# ---------------------------------------------------------------------------
# Forward pass (one pallas_call, one grid step)
# ---------------------------------------------------------------------------
def qt_regressor_forward(x_nchw, params):
    eps2d = 1e-3   # BatchNorm2d(eps=0.001) in the PyTorch module
    eps1d = 1e-5   # BatchNorm1d default eps
    bf16 = jnp.bfloat16

    Nb, F, H, W = x_nchw.shape
    F2 = 2 * F
    nq = params["b_q"].shape[0]
    nt = params["b_t"].shape[0]
    n_head = nq + nt
    NP = max(128, ((n_head + 127) // 128) * 128)   # lane-dense padded head width

    # NCHW -> (Nb*H*W, F) bf16: one fused XLA layout pass on the tiny input.
    x_flat = jnp.transpose(x_nchw, (0, 2, 3, 1)).reshape(Nb * H * W, F).astype(bf16)

    # Trace-time constants: stacked conv-tap selector and avg-pool matrix.
    sel_np, HoWo = _build_selectors(Nb, H, W)
    sel = jnp.asarray(sel_np, dtype=bf16)                   # (9*Nb*HoWo, Nb*H*W)
    pool_np = np.zeros((Nb, Nb * HoWo), np.float32)
    for b in range(Nb):
        pool_np[b, b * HoWo:(b + 1) * HoWo] = 1.0 / HoWo
    pool = jnp.asarray(pool_np, dtype=bf16)                 # (Nb, Nb*HoWo)

    # Fold BN scales into (bf16) weights; only the shifts go to the kernel.
    s1, b1 = fold_bn(*params["bn1"], eps2d)
    s2, b2 = fold_bn(*params["bn2"], eps2d)
    s3, b3 = fold_bn(*params["bn3"], eps2d)
    s4, b4 = fold_bn(*params["bn4"], eps1d)

    w1 = (params["w_conv1"] * s1[None, :]).astype(bf16)                       # (F, F)
    w2s = (params["w_conv2"] * s2[None, None, None, :]).reshape(9, F, F)      # (9, F, F)
    w2cat = jnp.transpose(w2s, (1, 0, 2)).reshape(F, 9 * F).astype(bf16)      # (F, 9F)
    w3s = jnp.concatenate([params["w_conv3"] * s3[None, :],                   # rows 0:F  -> conv3
                           params["w_short"] * s3[None, :]], axis=0).astype(bf16)  # rows F:2F -> shortcut
    wl = (params["w_lin"] * s4[None, :]).astype(bf16)                         # (2F, 2F)

    # Merged Q|T2d head, zero-padded to a 128-lane-dense slab.
    wh = jnp.concatenate([params["w_q"], params["w_t"]], axis=1)              # (2F, 6C)
    wh = jnp.pad(wh, ((0, 0), (0, NP - n_head))).astype(bf16)                 # (2F, NP)
    bh = jnp.pad(jnp.concatenate([params["b_q"], params["b_t"]]),
                 (0, NP - n_head)).reshape(1, NP)

    b1 = b1.reshape(1, F)
    b2 = b2.reshape(1, F)
    b3 = b3.reshape(1, F2)
    b4 = b4.reshape(1, F2)

    args = (x_flat, sel, pool, w1, b1, w2cat, b2, w3s, b3, wl, b4, wh, bh)

    out = pl.pallas_call(
        _qt_fused_kernel,
        out_shape=jax.ShapeDtypeStruct((Nb, NP), jnp.float32),
        grid=(1,),                        # whole batch stacked in M: single step
        in_specs=[pl.BlockSpec(a.shape, lambda i: (0, 0)) for a in args],
        out_specs=pl.BlockSpec((Nb, NP), lambda i: (0, 0)),
        compiler_params=pltpu.CompilerParams(
            dimension_semantics=("arbitrary",)),
    )(*args)

    Q = out[:, :nq]
    T2d = out[:, nq:n_head]
    return Q, T2d


# ---------------------------------------------------------------------------
# Pure-XLA eval-mode reference (f32, unfolded BN) for a tolerance check.
# ---------------------------------------------------------------------------
def _reference_forward(x, p):
    eps2d, eps1d = 1e-3, 1e-5

    def bn2d(v, bn, eps):
        g, b, m, var = bn
        inv = g / jnp.sqrt(var + eps)
        return v * inv[None, :, None, None] + (b - m * inv)[None, :, None, None]

    h = jnp.einsum("nchw,cd->ndhw", x, p["w_conv1"])
    h = jax.nn.relu(bn2d(h, p["bn1"], eps2d))
    w2 = jnp.transpose(p["w_conv2"], (3, 2, 0, 1))             # (cout, cin, kh, kw)
    h = jax.lax.conv_general_dilated(h, w2, window_strides=(2, 2),
                                     padding=((1, 1), (1, 1)),
                                     dimension_numbers=("NCHW", "OIHW", "NCHW"))
    h = jax.nn.relu(bn2d(h, p["bn2"], eps2d))
    h3 = jnp.einsum("nchw,cd->ndhw", h, p["w_conv3"])
    sc = jnp.einsum("nchw,cd->ndhw", x[:, :, ::2, ::2], p["w_short"])
    y = jax.nn.relu(bn2d(h3 + sc, p["bn3"], eps2d))
    feat = jnp.mean(y, axis=(2, 3)) @ p["w_lin"]
    g, b, m, var = p["bn4"]
    feat = jax.nn.relu((feat - m) / jnp.sqrt(var + eps1d) * g + b)
    return feat @ p["w_q"] + p["b_q"], feat @ p["w_t"] + p["b_t"]


# ---------------------------------------------------------------------------
if __name__ == "__main__":
    key = jax.random.PRNGKey(0)
    kx, kp = jax.random.split(key)

    filters = 32
    num_cluster = 1
    # PyTorch-convention NCHW input: (batch=2, channels=filters, H=8, W=8)
    x = jax.random.normal(kx, (2, filters, 8, 8), dtype=jnp.float32)
    params = init_params(kp, filters=filters, num_cluster=num_cluster)

    fwd = jax.jit(qt_regressor_forward)
    Q, T2d = fwd(x, params)
    jax.block_until_ready((Q, T2d))

    assert Q.shape == (2, num_cluster * 4), Q.shape
    assert T2d.shape == (2, num_cluster * 2), T2d.shape
    assert bool(jnp.all(jnp.isfinite(Q))) and bool(jnp.all(jnp.isfinite(T2d)))

    # Tolerance check against the plain-XLA f32 reference (bf16 folded weights
    # in the kernel => small absolute differences expected).
    Q_ref, T_ref = _reference_forward(x, params)
    np.testing.assert_allclose(np.asarray(Q), np.asarray(Q_ref), atol=2e-2, rtol=0)
    np.testing.assert_allclose(np.asarray(T2d), np.asarray(T_ref), atol=2e-2, rtol=0)

    print("KERNEL_OK")
</pallas_src>

<mosaic_0001>
module attributes {stable_mosaic.version = 11 : i64} {
  func.func @_qt_fused_kernel(%arg0: i32, %arg1: memref<128x32xbf16, #tpu.memory_space<vmem>>, %arg2: memref<288x128xbf16, #tpu.memory_space<vmem>>, %arg3: memref<2x32xbf16, #tpu.memory_space<vmem>>, %arg4: memref<32x32xbf16, #tpu.memory_space<vmem>>, %arg5: memref<1x32xf32, #tpu.memory_space<vmem>>, %arg6: memref<32x288xbf16, #tpu.memory_space<vmem>>, %arg7: memref<1x32xf32, #tpu.memory_space<vmem>>, %arg8: memref<64x64xbf16, #tpu.memory_space<vmem>>, %arg9: memref<1x64xf32, #tpu.memory_space<vmem>>, %arg10: memref<64x64xbf16, #tpu.memory_space<vmem>>, %arg11: memref<1x64xf32, #tpu.memory_space<vmem>>, %arg12: memref<64x128xbf16, #tpu.memory_space<vmem>>, %arg13: memref<1x128xf32, #tpu.memory_space<vmem>>, %arg14: memref<2x128xf32, #tpu.memory_space<vmem>>) attributes {dimension_semantics = [#tpu.dimension_semantics<arbitrary>], iteration_bounds = array<i64: 1>, scalar_prefetch = 0 : i64, scratch_operands = 0 : i64, tpu.core_type = #tpu.core_type<tc>, window_params = [{pipeline_mode = #tpu.pipeline_mode<synchronous>, transform_indices = @transform_0, window_bounds = array<i64: 128, 32>}, {pipeline_mode = #tpu.pipeline_mode<synchronous>, transform_indices = @transform_1, window_bounds = array<i64: 288, 128>}, {pipeline_mode = #tpu.pipeline_mode<synchronous>, transform_indices = @transform_2, window_bounds = array<i64: 2, 32>}, {pipeline_mode = #tpu.pipeline_mode<synchronous>, transform_indices = @transform_3, window_bounds = array<i64: 32, 32>}, {pipeline_mode = #tpu.pipeline_mode<synchronous>, transform_indices = @transform_4, window_bounds = array<i64: 1, 32>}, {pipeline_mode = #tpu.pipeline_mode<synchronous>, transform_indices = @transform_5, window_bounds = array<i64: 32, 288>}, {pipeline_mode = #tpu.pipeline_mode<synchronous>, transform_indices = @transform_6, window_bounds = array<i64: 1, 32>}, {pipeline_mode = #tpu.pipeline_mode<synchronous>, transform_indices = @transform_7, window_bounds = array<i64: 64, 64>}, {pipeline_mode = #tpu.pipeline_mode<synchronous>, transform_indices = @transform_8, window_bounds = array<i64: 1, 64>}, {pipeline_mode = #tpu.pipeline_mode<synchronous>, transform_indices = @transform_9, window_bounds = array<i64: 64, 64>}, {pipeline_mode = #tpu.pipeline_mode<synchronous>, transform_indices = @transform_10, window_bounds = array<i64: 1, 64>}, {pipeline_mode = #tpu.pipeline_mode<synchronous>, transform_indices = @transform_11, window_bounds = array<i64: 64, 128>}, {pipeline_mode = #tpu.pipeline_mode<synchronous>, transform_indices = @transform_12, window_bounds = array<i64: 1, 128>}, {pipeline_mode = #tpu.pipeline_mode<synchronous>, transform_indices = @transform_13, window_bounds = array<i64: 2, 128>}]} {
    %c0 = arith.constant 0 : index
    %c0_0 = arith.constant 0 : index
    %0 = vector.load %arg1[%c0, %c0_0] : memref<128x32xbf16, #tpu.memory_space<vmem>>, vector<128x32xbf16>
    %c0_1 = arith.constant 0 : index
    %c0_2 = arith.constant 0 : index
    %1 = vector.load %arg4[%c0_1, %c0_2] : memref<32x32xbf16, #tpu.memory_space<vmem>>, vector<32x32xbf16>
    %cst = arith.constant dense<0.000000e+00> : vector<128x32xf32>
    %2 = tpu.matmul %0, %1, %cst {dimension_numbers = #tpu.dot_dimension_numbers<[1], [0], [0], [1], [0, 0, 1, 1], [], []>} : vector<128x32xbf16>, vector<32x32xbf16>, vector<128x32xf32> -> vector<128x32xf32>
    %c0_3 = arith.constant 0 : index
    %c0_4 = arith.constant 0 : index
    %3 = vector.load %arg5[%c0_3, %c0_4] : memref<1x32xf32, #tpu.memory_space<vmem>>, vector<1x32xf32>
    %4 = vector.broadcast %3 : vector<1x32xf32> to vector<128x32xf32>
    %5 = arith.addf %2, %4 : vector<128x32xf32>
    %cst_5 = arith.constant 0.000000e+00 : f32
    %6 = vector.broadcast %cst_5 : f32 to vector<128x32xf32>
    %7 = arith.maximumf %5, %6 : vector<128x32xf32>
    %8 = arith.truncf %7 : vector<128x32xf32> to vector<128x32xbf16>
    %9 = tpu.concatenate %8, %0 in 1 : vector<128x32xbf16>, vector<128x32xbf16> -> vector<128x64xbf16>
    %c0_6 = arith.constant 0 : index
    %c0_7 = arith.constant 0 : index
    %10 = vector.load %arg2[%c0_6, %c0_7] : memref<288x128xbf16, #tpu.memory_space<vmem>>, vector<288x128xbf16>
    %cst_8 = arith.constant dense<0.000000e+00> : vector<288x64xf32>
    %11 = tpu.matmul %10, %9, %cst_8 {dimension_numbers = #tpu.dot_dimension_numbers<[1], [0], [0], [1], [0, 0, 1, 1], [], []>} : vector<288x128xbf16>, vector<128x64xbf16>, vector<288x64xf32> -> vector<288x64xf32>
    %12 = vector.extract_strided_slice %11 {offsets = [0, 0], sizes = [288, 32], strides = [1, 1]} : vector<288x64xf32> to vector<288x32xf32>
    %13 = arith.truncf %12 : vector<288x32xf32> to vector<288x32xbf16>
    %14 = vector.extract_strided_slice %11 {offsets = [128, 32], sizes = [32, 32], strides = [1, 1]} : vector<288x64xf32> to vector<32x32xf32>
    %15 = arith.truncf %14 : vector<32x32xf32> to vector<32x32xbf16>
    %c0_9 = arith.constant 0 : index
    %c0_10 = arith.constant 0 : index
    %16 = vector.load %arg6[%c0_9, %c0_10] : memref<32x288xbf16, #tpu.memory_space<vmem>>, vector<32x288xbf16>
    %cst_11 = arith.constant dense<0.000000e+00> : vector<288x288xf32>
    %17 = tpu.matmul %13, %16, %cst_11 {dimension_numbers = #tpu.dot_dimension_numbers<[1], [0], [0], [1], [0, 0, 1, 1], [], []>} : vector<288x32xbf16>, vector<32x288xbf16>, vector<288x288xf32> -> vector<288x288xf32>
    %18 = vector.extract_strided_slice %17 {offsets = [0, 0], sizes = [32, 32], strides = [1, 1]} : vector<288x288xf32> to vector<32x32xf32>
    %19 = vector.extract_strided_slice %17 {offsets = [32, 32], sizes = [32, 32], strides = [1, 1]} : vector<288x288xf32> to vector<32x32xf32>
    %20 = arith.addf %18, %19 : vector<32x32xf32>
    %21 = vector.extract_strided_slice %17 {offsets = [64, 64], sizes = [32, 32], strides = [1, 1]} : vector<288x288xf32> to vector<32x32xf32>
    %22 = arith.addf %20, %21 : vector<32x32xf32>
    %23 = vector.extract_strided_slice %17 {offsets = [96, 96], sizes = [32, 32], strides = [1, 1]} : vector<288x288xf32> to vector<32x32xf32>
    %24 = arith.addf %22, %23 : vector<32x32xf32>
    %25 = vector.extract_strided_slice %17 {offsets = [128, 128], sizes = [32, 32], strides = [1, 1]} : vector<288x288xf32> to vector<32x32xf32>
    %26 = arith.addf %24, %25 : vector<32x32xf32>
    %27 = vector.extract_strided_slice %17 {offsets = [160, 160], sizes = [32, 32], strides = [1, 1]} : vector<288x288xf32> to vector<32x32xf32>
    %28 = arith.addf %26, %27 : vector<32x32xf32>
    %29 = vector.extract_strided_slice %17 {offsets = [192, 192], sizes = [32, 32], strides = [1, 1]} : vector<288x288xf32> to vector<32x32xf32>
    %30 = arith.addf %28, %29 : vector<32x32xf32>
    %31 = vector.extract_strided_slice %17 {offsets = [224, 224], sizes = [32, 32], strides = [1, 1]} : vector<288x288xf32> to vector<32x32xf32>
    %32 = arith.addf %30, %31 : vector<32x32xf32>
    %33 = vector.extract_strided_slice %17 {offsets = [256, 256], sizes = [32, 32], strides = [1, 1]} : vector<288x288xf32> to vector<32x32xf32>
    %34 = arith.addf %32, %33 : vector<32x32xf32>
    %c0_12 = arith.constant 0 : index
    %c0_13 = arith.constant 0 : index
    %35 = vector.load %arg7[%c0_12, %c0_13] : memref<1x32xf32, #tpu.memory_space<vmem>>, vector<1x32xf32>
    %36 = vector.broadcast %35 : vector<1x32xf32> to vector<32x32xf32>
    %37 = arith.addf %34, %36 : vector<32x32xf32>
    %cst_14 = arith.constant 0.000000e+00 : f32
    %38 = vector.broadcast %cst_14 : f32 to vector<32x32xf32>
    %39 = arith.maximumf %37, %38 : vector<32x32xf32>
    %40 = arith.truncf %39 : vector<32x32xf32> to vector<32x32xbf16>
    %41 = tpu.concatenate %40, %15 in 1 : vector<32x32xbf16>, vector<32x32xbf16> -> vector<32x64xbf16>
    %c0_15 = arith.constant 0 : index
    %c0_16 = arith.constant 0 : index
    %42 = vector.load %arg8[%c0_15, %c0_16] : memref<64x64xbf16, #tpu.memory_space<vmem>>, vector<64x64xbf16>
    %cst_17 = arith.constant dense<0.000000e+00> : vector<32x64xf32>
    %43 = tpu.matmul %41, %42, %cst_17 {dimension_numbers = #tpu.dot_dimension_numbers<[1], [0], [0], [1], [0, 0, 1, 1], [], []>} : vector<32x64xbf16>, vector<64x64xbf16>, vector<32x64xf32> -> vector<32x64xf32>
    %c0_18 = arith.constant 0 : index
    %c0_19 = arith.constant 0 : index
    %44 = vector.load %arg9[%c0_18, %c0_19] : memref<1x64xf32, #tpu.memory_space<vmem>>, vector<1x64xf32>
    %45 = vector.broadcast %44 : vector<1x64xf32> to vector<32x64xf32>
    %46 = arith.addf %43, %45 : vector<32x64xf32>
    %cst_20 = arith.constant 0.000000e+00 : f32
    %47 = vector.broadcast %cst_20 : f32 to vector<32x64xf32>
    %48 = arith.maximumf %46, %47 : vector<32x64xf32>
    %49 = arith.truncf %48 : vector<32x64xf32> to vector<32x64xbf16>
    %c0_21 = arith.constant 0 : index
    %c0_22 = arith.constant 0 : index
    %50 = vector.load %arg3[%c0_21, %c0_22] : memref<2x32xbf16, #tpu.memory_space<vmem>>, vector<2x32xbf16>
    %cst_23 = arith.constant dense<0.000000e+00> : vector<2x64xf32>
    %51 = tpu.matmul %50, %49, %cst_23 {dimension_numbers = #tpu.dot_dimension_numbers<[1], [0], [0], [1], [0, 0, 1, 1], [], []>} : vector<2x32xbf16>, vector<32x64xbf16>, vector<2x64xf32> -> vector<2x64xf32>
    %52 = arith.truncf %51 : vector<2x64xf32> to vector<2x64xbf16>
    %c0_24 = arith.constant 0 : index
    %c0_25 = arith.constant 0 : index
    %53 = vector.load %arg10[%c0_24, %c0_25] : memref<64x64xbf16, #tpu.memory_space<vmem>>, vector<64x64xbf16>
    %cst_26 = arith.constant dense<0.000000e+00> : vector<2x64xf32>
    %54 = tpu.matmul %52, %53, %cst_26 {dimension_numbers = #tpu.dot_dimension_numbers<[1], [0], [0], [1], [0, 0, 1, 1], [], []>} : vector<2x64xbf16>, vector<64x64xbf16>, vector<2x64xf32> -> vector<2x64xf32>
    %c0_27 = arith.constant 0 : index
    %c0_28 = arith.constant 0 : index
    %55 = vector.load %arg11[%c0_27, %c0_28] : memref<1x64xf32, #tpu.memory_space<vmem>>, vector<1x64xf32>
    %56 = vector.broadcast %55 : vector<1x64xf32> to vector<2x64xf32>
    %57 = arith.addf %54, %56 : vector<2x64xf32>
    %cst_29 = arith.constant 0.000000e+00 : f32
    %58 = vector.broadcast %cst_29 : f32 to vector<2x64xf32>
    %59 = arith.maximumf %57, %58 : vector<2x64xf32>
    %60 = arith.truncf %59 : vector<2x64xf32> to vector<2x64xbf16>
    %c0_30 = arith.constant 0 : index
    %c0_31 = arith.constant 0 : index
    %61 = vector.load %arg12[%c0_30, %c0_31] : memref<64x128xbf16, #tpu.memory_space<vmem>>, vector<64x128xbf16>
    %cst_32 = arith.constant dense<0.000000e+00> : vector<2x128xf32>
    %62 = tpu.matmul %60, %61, %cst_32 {dimension_numbers = #tpu.dot_dimension_numbers<[1], [0], [0], [1], [0, 0, 1, 1], [], []>} : vector<2x64xbf16>, vector<64x128xbf16>, vector<2x128xf32> -> vector<2x128xf32>
    %c0_33 = arith.constant 0 : index
    %c0_34 = arith.constant 0 : index
    %63 = vector.load %arg13[%c0_33, %c0_34] : memref<1x128xf32, #tpu.memory_space<vmem>>, vector<1x128xf32>
    %64 = vector.broadcast %63 : vector<1x128xf32> to vector<2x128xf32>
    %65 = arith.addf %62, %64 : vector<2x128xf32>
    %c0_35 = arith.constant 0 : index
    %c0_36 = arith.constant 0 : index
    %66 = vector.load %arg14[%c0_35, %c0_36] : memref<2x128xf32, #tpu.memory_space<vmem>>, vector<2x128xf32>
    tpu.vector_store %arg14[%c0_35, %c0_36], %65 {strides = array<i32>} : memref<2x128xf32, #tpu.memory_space<vmem>>, vector<2x128xf32>,
    return
  }
  func.func @transform_0(%arg0: i32) -> (i32, i32) {
    %c0_i32 = arith.constant 0 : i32
    %c0_i32_0 = arith.constant 0 : i32
    %c0_i32_1 = arith.constant 0 : i32
    return %c0_i32, %c0_i32_0 : i32, i32
  }
  func.func @transform_1(%arg0: i32) -> (i32, i32) {
    %c0_i32 = arith.constant 0 : i32
    %c0_i32_0 = arith.constant 0 : i32
    %c0_i32_1 = arith.constant 0 : i32
    return %c0_i32, %c0_i32_0 : i32, i32
  }
  func.func @transform_2(%arg0: i32) -> (i32, i32) {
    %c0_i32 = arith.constant 0 : i32
    %c0_i32_0 = arith.constant 0 : i32
    %c0_i32_1 = arith.constant 0 : i32
    return %c0_i32, %c0_i32_0 : i32, i32
  }
  func.func @transform_3(%arg0: i32) -> (i32, i32) {
    %c0_i32 = arith.constant 0 : i32
    %c0_i32_0 = arith.constant 0 : i32
    %c0_i32_1 = arith.constant 0 : i32
    return %c0_i32, %c0_i32_0 : i32, i32
  }
  func.func @transform_4(%arg0: i32) -> (i32, i32) {
    %c0_i32 = arith.constant 0 : i32
    %c0_i32_0 = arith.constant 0 : i32
    %c0_i32_1 = arith.constant 0 : i32
    return %c0_i32, %c0_i32_0 : i32, i32
  }
  func.func @transform_5(%arg0: i32) -> (i32, i32) {
    %c0_i32 = arith.constant 0 : i32
    %c0_i32_0 = arith.constant 0 : i32
    %c0_i32_1 = arith.constant 0 : i32
    return %c0_i32, %c0_i32_0 : i32, i32
  }
  func.func @transform_6(%arg0: i32) -> (i32, i32) {
    %c0_i32 = arith.constant 0 : i32
    %c0_i32_0 = arith.constant 0 : i32
    %c0_i32_1 = arith.constant 0 : i32
    return %c0_i32, %c0_i32_0 : i32, i32
  }
  func.func @transform_7(%arg0: i32) -> (i32, i32) {
    %c0_i32 = arith.constant 0 : i32
    %c0_i32_0 = arith.constant 0 : i32
    %c0_i32_1 = arith.constant 0 : i32
    return %c0_i32, %c0_i32_0 : i32, i32
  }
  func.func @transform_8(%arg0: i32) -> (i32, i32) {
    %c0_i32 = arith.constant 0 : i32
    %c0_i32_0 = arith.constant 0 : i32
    %c0_i32_1 = arith.constant 0 : i32
    return %c0_i32, %c0_i32_0 : i32, i32
  }
  func.func @transform_9(%arg0: i32) -> (i32, i32) {
    %c0_i32 = arith.constant 0 : i32
    %c0_i32_0 = arith.constant 0 : i32
    %c0_i32_1 = arith.constant 0 : i32
    return %c0_i32, %c0_i32_0 : i32, i32
  }
  func.func @transform_10(%arg0: i32) -> (i32, i32) {
    %c0_i32 = arith.constant 0 : i32
    %c0_i32_0 = arith.constant 0 : i32
    %c0_i32_1 = arith.constant 0 : i32
    return %c0_i32, %c0_i32_0 : i32, i32
  }
  func.func @transform_11(%arg0: i32) -> (i32, i32) {
    %c0_i32 = arith.constant 0 : i32
    %c0_i32_0 = arith.constant 0 : i32
    %c0_i32_1 = arith.constant 0 : i32
    return %c0_i32, %c0_i32_0 : i32, i32
  }
  func.func @transform_12(%arg0: i32) -> (i32, i32) {
    %c0_i32 = arith.constant 0 : i32
    %c0_i32_0 = arith.constant 0 : i32
    %c0_i32_1 = arith.constant 0 : i32
    return %c0_i32, %c0_i32_0 : i32, i32
  }
  func.func @transform_13(%arg0: i32) -> (i32, i32) {
    %c0_i32 = arith.constant 0 : i32
    %c0_i32_0 = arith.constant 0 : i32
    %c0_i32_1 = arith.constant 0 : i32
    return %c0_i32, %c0_i32_0 : i32, i32
  }
}

</mosaic_0001>

<llo_original>
// kernel: qt_regressor_forward.1
$region0: #{qt_regressor_forward.1}
  #allocation0 [shape = 'u32[]', space=smem, size = 0x4, offset = 0x4, fixed_abs, tag = 'smem constant byte address 0x4 - core index']
  #allocation1 [shape = 'u32[144,128]{1,0:T(1,128)}', space=vmem, size = 0x12000, scoped, tag = 'internal scratch']
  %s0 = inlined_call_operand.vmem [shape: bf16[128,32], index: 0, kind: input, shape index: {}]
  %s1 = inlined_call_operand.vmem [shape: bf16[288,128], index: 1, kind: input, shape index: {}]
  %s2 = inlined_call_operand.vmem [shape: bf16[2,32], index: 2, kind: input, shape index: {}]
  %s3 = inlined_call_operand.vmem [shape: bf16[32,32], index: 3, kind: input, shape index: {}]
  %s4 = inlined_call_operand.vmem [shape: f32[1,32], index: 4, kind: input, shape index: {}]
  %s5 = inlined_call_operand.vmem [shape: bf16[32,288], index: 5, kind: input, shape index: {}]
  %s6 = inlined_call_operand.vmem [shape: f32[1,32], index: 6, kind: input, shape index: {}]
  %s7 = inlined_call_operand.vmem [shape: bf16[64,64], index: 7, kind: input, shape index: {}]
  %s8 = inlined_call_operand.vmem [shape: f32[1,64], index: 8, kind: input, shape index: {}]
  %s9 = inlined_call_operand.vmem [shape: bf16[64,64], index: 9, kind: input, shape index: {}]
  %s10 = inlined_call_operand.vmem [shape: f32[1,64], index: 10, kind: input, shape index: {}]
  %s11 = inlined_call_operand.vmem [shape: bf16[64,128], index: 11, kind: input, shape index: {}]
  %s12 = inlined_call_operand.vmem [shape: f32[1,128], index: 12, kind: input, shape index: {}]
  %s13 = inlined_call_operand.vmem [shape: f32[2,128], index: 13, kind: output, shape index: {}]
  %s14 = sld [smem:[#allocation0]]
  $region62: #{qt_regressor_forward.1} parent=0
    _
  %s16 = ssub.s32 1, %s14
  %s17 = scalar_select 0, %s16, %s14
  // Predicated region
  $region2: #{qt_regressor_forward.1} parent=0 // pred_check
    _
  $region3: #{qt_regressor_forward.1} parent=0 // pred_check_branch
    %19 = sbr.rel (0) target = $region5
  $region4: #{qt_regressor_forward.1} parent=0 // pred_region
    _
  $region5: #{qt_regressor_forward.1} parent=0 // pred_fallthru
    _
  // Predicated region
  $region6: #{qt_regressor_forward.1} parent=0 // pred_check
    _
  $region7: #{qt_regressor_forward.1} parent=0 // pred_check_branch
    %21 = sbr.rel (0) target = $region9
  $region8: #{qt_regressor_forward.1} parent=0 // pred_region
    _
  $region9: #{qt_regressor_forward.1} parent=0 // pred_fallthru
    _
  // Predicated region
  $region10: #{qt_regressor_forward.1} parent=0 // pred_check
    _
  $region11: #{qt_regressor_forward.1} parent=0 // pred_check_branch
    %23 = sbr.rel (0) target = $region13
  $region12: #{qt_regressor_forward.1} parent=0 // pred_region
    _
  $region13: #{qt_regressor_forward.1} parent=0 // pred_fallthru
    _
  // Predicated region
  $region14: #{qt_regressor_forward.1} parent=0 // pred_check
    _
  $region15: #{qt_regressor_forward.1} parent=0 // pred_check_branch
    %25 = sbr.rel (0) target = $region17
  $region16: #{qt_regressor_forward.1} parent=0 // pred_region
    _
  $region17: #{qt_regressor_forward.1} parent=0 // pred_fallthru
    _
  // Predicated region
  $region18: #{qt_regressor_forward.1} parent=0 // pred_check
    _
  $region19: #{qt_regressor_forward.1} parent=0 // pred_check_branch
    %27 = sbr.rel (0) target = $region21
  $region20: #{qt_regressor_forward.1} parent=0 // pred_region
    _
  $region21: #{qt_regressor_forward.1} parent=0 // pred_fallthru
    _
  // Predicated region
  $region22: #{qt_regressor_forward.1} parent=0 // pred_check
    _
  $region23: #{qt_regressor_forward.1} parent=0 // pred_check_branch
    %29 = sbr.rel (0) target = $region25
  $region24: #{qt_regressor_forward.1} parent=0 // pred_region
    _
  $region25: #{qt_regressor_forward.1} parent=0 // pred_fallthru
    _
  // Predicated region
  $region26: #{qt_regressor_forward.1} parent=0 // pred_check
    _
  $region27: #{qt_regressor_forward.1} parent=0 // pred_check_branch
    %31 = sbr.rel (0) target = $region29
  $region28: #{qt_regressor_forward.1} parent=0 // pred_region
    _
  $region29: #{qt_regressor_forward.1} parent=0 // pred_fallthru
    _
  // Predicated region
  $region30: #{qt_regressor_forward.1} parent=0 // pred_check
    _
  $region31: #{qt_regressor_forward.1} parent=0 // pred_check_branch
    %33 = sbr.rel (0) target = $region33
  $region32: #{qt_regressor_forward.1} parent=0 // pred_region
    _
  $region33: #{qt_regressor_forward.1} parent=0 // pred_fallthru
    _
  // Predicated region
  $region34: #{qt_regressor_forward.1} parent=0 // pred_check
    _
  $region35: #{qt_regressor_forward.1} parent=0 // pred_check_branch
    %35 = sbr.rel (0) target = $region37
  $region36: #{qt_regressor_forward.1} parent=0 // pred_region
    _
  $region37: #{qt_regressor_forward.1} parent=0 // pred_fallthru
    _
  // Predicated region
  $region38: #{qt_regressor_forward.1} parent=0 // pred_check
    _
  $region39: #{qt_regressor_forward.1} parent=0 // pred_check_branch
    %37 = sbr.rel (0) target = $region41
  $region40: #{qt_regressor_forward.1} parent=0 // pred_region
    _
  $region41: #{qt_regressor_forward.1} parent=0 // pred_fallthru
    _
  // Predicated region
  $region42: #{qt_regressor_forward.1} parent=0 // pred_check
    _
  $region43: #{qt_regressor_forward.1} parent=0 // pred_check_branch
    %39 = sbr.rel (0) target = $region45
  $region44: #{qt_regressor_forward.1} parent=0 // pred_region
    _
  $region45: #{qt_regressor_forward.1} parent=0 // pred_fallthru
    _
  // Predicated region
  $region46: #{qt_regressor_forward.1} parent=0 // pred_check
    _
  $region47: #{qt_regressor_forward.1} parent=0 // pred_check_branch
    %41 = sbr.rel (0) target = $region49
  $region48: #{qt_regressor_forward.1} parent=0 // pred_region
    _
  $region49: #{qt_regressor_forward.1} parent=0 // pred_fallthru
    _
  // Predicated region
  $region50: #{qt_regressor_forward.1} parent=0 // pred_check
    _
  $region51: #{qt_regressor_forward.1} parent=0 // pred_check_branch
    %43 = sbr.rel (0) target = $region53
  $region52: #{qt_regressor_forward.1} parent=0 // pred_region
    _
  $region53: #{qt_regressor_forward.1} parent=0 // pred_fallthru
    _
  %v45 = vld [vmem:[%s0] sm:$0xf]
  %v46 = vld [vmem:[%s0 + $0x4] sm:$0xf]
  %v47 = vld [vmem:[%s0 + $0x8] sm:$0xf]
  %v48 = vld [vmem:[%s0 + $0xc] sm:$0xf]
  %v49 = vld [vmem:[%s0 + $0x10] sm:$0xf]
  %v50 = vld [vmem:[%s0 + $0x14] sm:$0xf]
  %v51 = vld [vmem:[%s0 + $0x18] sm:$0xf]
  %v52 = vld [vmem:[%s0 + $0x1c] sm:$0xf]
  %v53 = vld [vmem:[%s0 + $0x20] sm:$0xf]
  %v54 = vld [vmem:[%s0 + $0x24] sm:$0xf]
  %v55 = vld [vmem:[%s0 + $0x28] sm:$0xf]
  %v56 = vld [vmem:[%s0 + $0x2c] sm:$0xf]
  %v57 = vld [vmem:[%s0 + $0x30] sm:$0xf]
  %v58 = vld [vmem:[%s0 + $0x34] sm:$0xf]
  %v59 = vld [vmem:[%s0 + $0x38] sm:$0xf]
  %v60 = vld [vmem:[%s0 + $0x3c] sm:$0xf]
  %v61 = vld [vmem:[%s3] sm:$0xf]
  %v62 = vld [vmem:[%s3 + $0x4] sm:$0xf]
  %v63 = vld [vmem:[%s3 + $0x8] sm:$0xf]
  %v64 = vld [vmem:[%s3 + $0xc] sm:$0xf]
  %v65 = vld [vmem:[%s4] sm:$0x1]
  %v67 = vlaneseq
  %v68 = vshrl.u32 %v67, 7
  %v69 = vsub.s32 0, %v68
  %v70 = vrot.slane %v65, %v69
  %v88 = vunpack.c.l.b16 %v45
  %v89 = vunpack.c.l.b16 %v46
  %v90 = vunpack.c.l.b16 %v47
  %v91 = vunpack.c.l.b16 %v48
  %v92 = vunpack.c.l.b16 %v49
  %v93 = vunpack.c.l.b16 %v50
  %v94 = vunpack.c.l.b16 %v51
  %v95 = vunpack.c.l.b16 %v52
  %v96 = vunpack.c.l.b16 %v53
  %v97 = vunpack.c.l.b16 %v54
  %v98 = vunpack.c.l.b16 %v55
  %v99 = vunpack.c.l.b16 %v56
  %v100 = vunpack.c.l.b16 %v57
  %v101 = vunpack.c.l.b16 %v58
  %v102 = vunpack.c.l.b16 %v59
  %v103 = vunpack.c.l.b16 %v60
  %v104 = vpack.c.b16 %v89, %v88
  %v105 = vpack.c.b16 %v91, %v90
  %v106 = vpack.c.b16 %v93, %v92
  %v107 = vpack.c.b16 %v95, %v94
  %v108 = vpack.c.b16 %v97, %v96
  %v109 = vpack.c.b16 %v99, %v98
  %v110 = vpack.c.b16 %v101, %v100
  %v111 = vpack.c.b16 %v103, %v102
  %v116 = vunpack.c.l.b16 %v61
  %v117 = vunpack.c.l.b16 %v62
  %v118 = vunpack.c.l.b16 %v63
  %v119 = vunpack.c.l.b16 %v64
  %v120 = vpack.c.b16 %v117, %v116
  %v121 = vpack.c.b16 %v119, %v118
  %vm124 = vcmask 261120
  %v126 = vsel %vm124, %v104, 0
  %v129 = vsel %vm124, %v105, 0
  %v132 = vsel %vm124, %v106, 0
  %v135 = vsel %vm124, %v107, 0
  %v138 = vsel %vm124, %v108, 0
  %v141 = vsel %vm124, %v109, 0
  %v144 = vsel %vm124, %v110, 0
  %v147 = vsel %vm124, %v111, 0
  %149 = vmatprep.subr.bf16.mxu0 0
  %150 = vmatpush1.bf16.msra.mxu0 0
  %151 = vmatprep.subr.bf16.mxu0 0
  %152 = vmatpush1.bf16.msra.mxu0 0
  %153 = vmatprep.subr.bf16.mxu0 0
  %154 = vmatpush1.bf16.msra.mxu0 0
  %155 = vmatprep.subr.bf16.mxu0 0
  %156 = vmatpush1.bf16.msra.mxu0 0
  %157 = vmatprep.subr.bf16.mxu0 0
  %158 = vmatpush1.bf16.msra.mxu0 0
  %159 = vmatprep.subr.bf16.mxu0 0
  %160 = vmatpush1.bf16.msra.mxu0 0
  %161 = vmatprep.subr.bf16.mxu0 0
  %162 = vmatpush1.bf16.msra.mxu0 %v121
  %163 = vmatprep.subr.bf16.mxu0 0
  %164 = vmatpush1.bf16.msra.mxu0 %v120
  %165 = vmatprep.subr.bf16.mxu0 0
  %166 = vmatpush2.bf16.msra.mxu0 0
  %167 = vmatprep.subr.bf16.mxu0 0
  %168 = vmatpush2.bf16.msra.mxu0 0
  %169 = vmatprep.subr.bf16.mxu0 0
  %170 = vmatpush2.bf16.msra.mxu0 0
  %171 = vmatprep.subr.bf16.mxu0 0
  %172 = vmatpush2.bf16.msra.mxu0 0
  %173 = vmatprep.subr.bf16.mxu0 0
  %174 = vmatpush2.bf16.msra.mxu0 0
  %175 = vmatprep.subr.bf16.mxu0 0
  %176 = vmatpush2.bf16.msra.mxu0 0
  %177 = vmatprep.subr.bf16.mxu0 0
  %178 = vmatpush2.bf16.msra.mxu0 0
  %179 = vmatprep.subr.bf16.mxu0 0
  %180 = vmatpush2.bf16.msra.mxu0 0
  %181 = vmatprep.mubr.bf16.mxu0 0
  %182 = vmatmul.mubr.bf16.gmra.mxu0 %v126
  %v183 = vpop.f32.mrf.mxu0
  %v184 = vadd.f32 %v70, %v183
  %v185 = vpop.f32.mrf.mxu0
  %v186 = vpop.f32.mrf.mxu0
  %v187 = vadd.f32 %v70, %v186
  %v188 = vpop.f32.mrf.mxu0
  %189 = vmatprep.mubr.bf16.mxu0 0
  %190 = vmatmul.mubr.bf16.gmra.mxu0 %v129
  %v191 = vpop.f32.mrf.mxu0
  %v192 = vadd.f32 %v70, %v191
  %v193 = vpop.f32.mrf.mxu0
  %v194 = vpop.f32.mrf.mxu0
  %v195 = vadd.f32 %v70, %v194
  %v196 = vpop.f32.mrf.mxu0
  %197 = vmatprep.mubr.bf16.mxu0 0
  %198 = vmatmul.mubr.bf16.gmra.mxu0 %v132
  %v199 = vpop.f32.mrf.mxu0
  %v200 = vadd.f32 %v70, %v199
  %v201 = vpop.f32.mrf.mxu0
  %v202 = vpop.f32.mrf.mxu0
  %v203 = vadd.f32 %v70, %v202
  %v204 = vpop.f32.mrf.mxu0
  %205 = vmatprep.mubr.bf16.mxu0 0
  %206 = vmatmul.mubr.bf16.gmra.mxu0 %v135
  %v207 = vpop.f32.mrf.mxu0
  %v208 = vadd.f32 %v70, %v207
  %v209 = vpop.f32.mrf.mxu0
  %v210 = vpop.f32.mrf.mxu0
  %v211 = vadd.f32 %v70, %v210
  %v212 = vpop.f32.mrf.mxu0
  %213 = vmatprep.mubr.bf16.mxu0 0
  %214 = vmatmul.mubr.bf16.gmra.mxu0 %v138
  %v215 = vpop.f32.mrf.mxu0
  %v216 = vadd.f32 %v70, %v215
  %v217 = vpop.f32.mrf.mxu0
  %v218 = vpop.f32.mrf.mxu0
  %v219 = vadd.f32 %v70, %v218
  %v220 = vpop.f32.mrf.mxu0
  %221 = vmatprep.mubr.bf16.mxu0 0
  %222 = vmatmul.mubr.bf16.gmra.mxu0 %v141
  %v223 = vpop.f32.mrf.mxu0
  %v224 = vadd.f32 %v70, %v223
  %v225 = vpop.f32.mrf.mxu0
  %v226 = vpop.f32.mrf.mxu0
  %v227 = vadd.f32 %v70, %v226
  %v228 = vpop.f32.mrf.mxu0
  %229 = vmatprep.mubr.bf16.mxu0 0
  %230 = vmatmul.mubr.bf16.gmra.mxu0 %v144
  %v231 = vpop.f32.mrf.mxu0
  %v232 = vadd.f32 %v70, %v231
  %v233 = vpop.f32.mrf.mxu0
  %v234 = vpop.f32.mrf.mxu0
  %v235 = vadd.f32 %v70, %v234
  %v236 = vpop.f32.mrf.mxu0
  %237 = vmatprep.mubr.bf16.mxu0 0
  %238 = vmatmul.mubr.bf16.gmra.mxu0 %v147
  %v239 = vpop.f32.mrf.mxu0
  %v240 = vadd.f32 %v70, %v239
  %v241 = vpop.f32.mrf.mxu0
  %v242 = vpop.f32.mrf.mxu0
  %v243 = vadd.f32 %v70, %v242
  %v244 = vpop.f32.mrf.mxu0
  %245 = vdwg.mxu0
  %v246 = vmax.f32 %v184, 0.0
  %v247 = vmax.f32 %v187, 0.0
  %v248 = vmax.f32 %v192, 0.0
  %v249 = vmax.f32 %v195, 0.0
  %v250 = vmax.f32 %v200, 0.0
  %v251 = vmax.f32 %v203, 0.0
  %v252 = vmax.f32 %v208, 0.0
  %v253 = vmax.f32 %v211, 0.0
  %v254 = vmax.f32 %v216, 0.0
  %v255 = vmax.f32 %v219, 0.0
  %v256 = vmax.f32 %v224, 0.0
  %v257 = vmax.f32 %v227, 0.0
  %v258 = vmax.f32 %v232, 0.0
  %v259 = vmax.f32 %v235, 0.0
  %v260 = vmax.f32 %v240, 0.0
  %v261 = vmax.f32 %v243, 0.0
  %v262 = vpack.c.bf16 %v247, %v246
  %v263 = vpack.c.bf16 %v249, %v248
  %v264 = vpack.c.bf16 %v251, %v250
  %v265 = vpack.c.bf16 %v253, %v252
  %v266 = vpack.c.bf16 %v255, %v254
  %v267 = vpack.c.bf16 %v257, %v256
  %v268 = vpack.c.bf16 %v259, %v258
  %v269 = vpack.c.bf16 %v261, %v260
  %270 = vrot.lane.b32.xlu0 %v104, 32
  %v271 = vpop.permute.xlu0 %270
  %272 = vrot.lane.b32.xlu0 %v105, 32
  %v273 = vpop.permute.xlu0 %272
  %274 = vrot.lane.b32.xlu0 %v106, 32
  %v275 = vpop.permute.xlu0 %274
  %276 = vrot.lane.b32.xlu0 %v107, 32
  %v277 = vpop.permute.xlu0 %276
  %278 = vrot.lane.b32.xlu0 %v108, 32
  %v279 = vpop.permute.xlu0 %278
  %280 = vrot.lane.b32.xlu0 %v109, 32
  %v281 = vpop.permute.xlu0 %280
  %282 = vrot.lane.b32.xlu0 %v110, 32
  %v283 = vpop.permute.xlu0 %282
  %284 = vrot.lane.b32.xlu0 %v111, 32
  %v285 = vpop.permute.xlu0 %284
  %v288 = vsel %vm124, %v262, %v271
  %v292 = vsel %vm124, %v263, %v273
  %v296 = vsel %vm124, %v264, %v275
  %v300 = vsel %vm124, %v265, %v277
  %v304 = vsel %vm124, %v266, %v279
  %v308 = vsel %vm124, %v267, %v281
  %v312 = vsel %vm124, %v268, %v283
  %v316 = vsel %vm124, %v269, %v285
  %v318 = vld [vmem:[%s1] sm:$0xf]
  %v319 = vld [vmem:[%s1 + $0x4] sm:$0xf]
  %v320 = vld [vmem:[%s1 + $0x8] sm:$0xf]
  %v321 = vld [vmem:[%s1 + $0xc] sm:$0xf]
  %v322 = vld [vmem:[%s1 + $0x10] sm:$0xf]
  %v323 = vld [vmem:[%s1 + $0x14] sm:$0xf]
  %v324 = vld [vmem:[%s1 + $0x18] sm:$0xf]
  %v325 = vld [vmem:[%s1 + $0x1c] sm:$0xf]
  %v326 = vld [vmem:[%s1 + $0x20] sm:$0xf]
  %v327 = vld [vmem:[%s1 + $0x24] sm:$0xf]
  %v328 = vld [vmem:[%s1 + $0x28] sm:$0xf]
  %v329 = vld [vmem:[%s1 + $0x2c] sm:$0xf]
  %v330 = vld [vmem:[%s1 + $0x30] sm:$0xf]
  %v331 = vld [vmem:[%s1 + $0x34] sm:$0xf]
  %v332 = vld [vmem:[%s1 + $0x38] sm:$0xf]
  %v333 = vld [vmem:[%s1 + $0x3c] sm:$0xf]
  %v334 = vld [vmem:[%s1 + $0x40] sm:$0xf]
  %v335 = vld [vmem:[%s1 + $0x44] sm:$0xf]
  %v336 = vld [vmem:[%s1 + $0x48] sm:$0xf]
  %v337 = vld [vmem:[%s1 + $0x4c] sm:$0xf]
  %v338 = vld [vmem:[%s1 + $0x50] sm:$0xf]
  %v339 = vld [vmem:[%s1 + $0x54] sm:$0xf]
  %v340 = vld [vmem:[%s1 + $0x58] sm:$0xf]
  %v341 = vld [vmem:[%s1 + $0x5c] sm:$0xf]
  %v342 = vld [vmem:[%s1 + $0x60] sm:$0xf]
  %v343 = vld [vmem:[%s1 + $0x64] sm:$0xf]
  %v344 = vld [vmem:[%s1 + $0x68] sm:$0xf]
  %v345 = vld [vmem:[%s1 + $0x6c] sm:$0xf]
  %v346 = vld [vmem:[%s1 + $0x70] sm:$0xf]
  %v347 = vld [vmem:[%s1 + $0x74] sm:$0xf]
  %v348 = vld [vmem:[%s1 + $0x78] sm:$0xf]
  %v349 = vld [vmem:[%s1 + $0x7c] sm:$0xf]
  %v350 = vld [vmem:[%s1 + $0x80] sm:$0xf]
  %v351 = vld [vmem:[%s1 + $0x84] sm:$0xf]
  %v352 = vld [vmem:[%s1 + $0x88] sm:$0xf]
  %v353 = vld [vmem:[%s1 + $0x8c] sm:$0xf]
  %v390 = vunpack.c.l.b16 %v318
  %v391 = vunpack.c.l.b16 %v319
  %v392 = vunpack.c.l.b16 %v320
  %v393 = vunpack.c.l.b16 %v321
  %v394 = vunpack.c.l.b16 %v322
  %v395 = vunpack.c.l.b16 %v323
  %v396 = vunpack.c.l.b16 %v324
  %v397 = vunpack.c.l.b16 %v325
  %v398 = vunpack.c.l.b16 %v326
  %v399 = vunpack.c.l.b16 %v327
  %v400 = vunpack.c.l.b16 %v328
  %v401 = vunpack.c.l.b16 %v329
  %v402 = vunpack.c.l.b16 %v330
  %v403 = vunpack.c.l.b16 %v331
  %v404 = vunpack.c.l.b16 %v332
  %v405 = vunpack.c.l.b16 %v333
  %v406 = vunpack.c.l.b16 %v334
  %v407 = vunpack.c.l.b16 %v335
  %v408 = vunpack.c.l.b16 %v336
  %v409 = vunpack.c.l.b16 %v337
  %v410 = vunpack.c.l.b16 %v338
  %v411 = vunpack.c.l.b16 %v339
  %v412 = vunpack.c.l.b16 %v340
  %v413 = vunpack.c.l.b16 %v341
  %v414 = vunpack.c.l.b16 %v342
  %v415 = vunpack.c.l.b16 %v343
  %v416 = vunpack.c.l.b16 %v344
  %v417 = vunpack.c.l.b16 %v345
  %v418 = vunpack.c.l.b16 %v346
  %v419 = vunpack.c.l.b16 %v347
  %v420 = vunpack.c.l.b16 %v348
  %v421 = vunpack.c.l.b16 %v349
  %v422 = vunpack.c.l.b16 %v350
  %v423 = vunpack.c.l.b16 %v351
  %v424 = vunpack.c.l.b16 %v352
  %v425 = vunpack.c.l.b16 %v353
  %v426 = vpack.c.b16 %v391, %v390
  %v427 = vpack.c.b16 %v393, %v392
  %v428 = vpack.c.b16 %v395, %v394
  %v429 = vpack.c.b16 %v397, %v396
  %v430 = vpack.c.b16 %v399, %v398
  %v431 = vpack.c.b16 %v401, %v400
  %v432 = vpack.c.b16 %v403, %v402
  %v433 = vpack.c.b16 %v405, %v404
  %v434 = vpack.c.b16 %v407, %v406
  %v435 = vpack.c.b16 %v409, %v408
  %v436 = vpack.c.b16 %v411, %v410
  %v437 = vpack.c.b16 %v413, %v412
  %v438 = vpack.c.b16 %v415, %v414
  %v439 = vpack.c.b16 %v417, %v416
  %v440 = vpack.c.b16 %v419, %v418
  %v441 = vpack.c.b16 %v421, %v420
  %v442 = vpack.c.b16 %v423, %v422
  %v443 = vpack.c.b16 %v425, %v424
  %462 = vmatprep.subr.bf16.mxu0 0
  %463 = vmatpush1.bf16.msra.mxu0 %v316
  %464 = vmatprep.subr.bf16.mxu0 0
  %465 = vmatpush1.bf16.msra.mxu0 %v312
  %466 = vmatprep.subr.bf16.mxu0 0
  %467 = vmatpush1.bf16.msra.mxu0 %v308
  %468 = vmatprep.subr.bf16.mxu0 0
  %469 = vmatpush1.bf16.msra.mxu0 %v304
  %470 = vmatprep.subr.bf16.mxu0 0
  %471 = vmatpush1.bf16.msra.mxu0 %v300
  %472 = vmatprep.subr.bf16.mxu0 0
  %473 = vmatpush1.bf16.msra.mxu0 %v296
  %474 = vmatprep.subr.bf16.mxu0 0
  %475 = vmatpush1.bf16.msra.mxu0 %v292
  %476 = vmatprep.subr.bf16.mxu0 0
  %477 = vmatpush1.bf16.msra.mxu0 %v288
  %478 = vmatprep.subr.bf16.mxu0 0
  %479 = vmatpush2.bf16.msra.mxu0 0
  %480 = vmatprep.subr.bf16.mxu0 0
  %481 = vmatpush2.bf16.msra.mxu0 0
  %482 = vmatprep.subr.bf16.mxu0 0
  %483 = vmatpush2.bf16.msra.mxu0 0
  %484 = vmatprep.subr.bf16.mxu0 0
  %485 = vmatpush2.bf16.msra.mxu0 0
  %486 = vmatprep.subr.bf16.mxu0 0
  %487 = vmatpush2.bf16.msra.mxu0 0
  %488 = vmatprep.subr.bf16.mxu0 0
  %489 = vmatpush2.bf16.msra.mxu0 0
  %490 = vmatprep.subr.bf16.mxu0 0
  %491 = vmatpush2.bf16.msra.mxu0 0
  %492 = vmatprep.subr.bf16.mxu0 0
  %493 = vmatpush2.bf16.msra.mxu0 0
  %494 = vmatprep.mubr.bf16.mxu0 0
  %495 = vmatmul.mubr.bf16.gmra.mxu0 %v426
  %v496 = vpop.f32.mrf.mxu0
  %v497 = vadd.f32 0.0, %v496
  %v498 = vpop.f32.mrf.mxu0
  %v499 = vpop.f32.mrf.mxu0
  %v500 = vadd.f32 0.0, %v499
  %v501 = vpop.f32.mrf.mxu0
  %502 = vmatprep.mubr.bf16.mxu0 0
  %503 = vmatmul.mubr.bf16.gmra.mxu0 %v427
  %v504 = vpop.f32.mrf.mxu0
  %v505 = vadd.f32 0.0, %v504
  %v506 = vpop.f32.mrf.mxu0
  %v507 = vpop.f32.mrf.mxu0
  %v508 = vadd.f32 0.0, %v507
  %v509 = vpop.f32.mrf.mxu0
  %510 = vmatprep.mubr.bf16.mxu0 0
  %511 = vmatmul.mubr.bf16.gmra.mxu0 %v428
  %v512 = vpop.f32.mrf.mxu0
  %v513 = vadd.f32 0.0, %v512
  %v514 = vpop.f32.mrf.mxu0
  %v515 = vpop.f32.mrf.mxu0
  %v516 = vadd.f32 0.0, %v515
  %v517 = vpop.f32.mrf.mxu0
  %518 = vmatprep.mubr.bf16.mxu0 0
  %519 = vmatmul.mubr.bf16.gmra.mxu0 %v429
  %v520 = vpop.f32.mrf.mxu0
  %v521 = vadd.f32 0.0, %v520
  %v522 = vpop.f32.mrf.mxu0
  %v523 = vpop.f32.mrf.mxu0
  %v524 = vadd.f32 0.0, %v523
  %v525 = vpop.f32.mrf.mxu0
  %526 = vmatprep.mubr.bf16.mxu0 0
  %527 = vmatmul.mubr.bf16.gmra.mxu0 %v430
  %v528 = vpop.f32.mrf.mxu0
  %v529 = vadd.f32 0.0, %v528
  %v530 = vpop.f32.mrf.mxu0
  %v531 = vpop.f32.mrf.mxu0
  %v532 = vadd.f32 0.0, %v531
  %v533 = vpop.f32.mrf.mxu0
  %534 = vmatprep.mubr.bf16.mxu0 0
  %535 = vmatmul.mubr.bf16.gmra.mxu0 %v431
  %v536 = vpop.f32.mrf.mxu0
  %v537 = vadd.f32 0.0, %v536
  %v538 = vpop.f32.mrf.mxu0
  %v539 = vpop.f32.mrf.mxu0
  %v540 = vadd.f32 0.0, %v539
  %v541 = vpop.f32.mrf.mxu0
  %542 = vmatprep.mubr.bf16.mxu0 0
  %543 = vmatmul.mubr.bf16.gmra.mxu0 %v432
  %v544 = vpop.f32.mrf.mxu0
  %v545 = vadd.f32 0.0, %v544
  %v546 = vpop.f32.mrf.mxu0
  %v547 = vpop.f32.mrf.mxu0
  %v548 = vadd.f32 0.0, %v547
  %v549 = vpop.f32.mrf.mxu0
  %550 = vmatprep.mubr.bf16.mxu0 0
  %551 = vmatmul.mubr.bf16.gmra.mxu0 %v433
  %v552 = vpop.f32.mrf.mxu0
  %v553 = vadd.f32 0.0, %v552
  %v554 = vpop.f32.mrf.mxu0
  %v555 = vpop.f32.mrf.mxu0
  %v556 = vadd.f32 0.0, %v555
  %v557 = vpop.f32.mrf.mxu0
  %558 = vmatprep.mubr.bf16.mxu0 0
  %559 = vmatmul.mubr.bf16.gmra.mxu0 %v434
  %v560 = vpop.f32.mrf.mxu0
  %v561 = vadd.f32 0.0, %v560
  %v562 = vpop.f32.mrf.mxu0
  %v563 = vpop.f32.mrf.mxu0
  %v564 = vadd.f32 0.0, %v563
  %v565 = vpop.f32.mrf.mxu0
  %566 = vmatprep.mubr.bf16.mxu0 0
  %567 = vmatmul.mubr.bf16.gmra.mxu0 %v435
  %v568 = vpop.f32.mrf.mxu0
  %v569 = vadd.f32 0.0, %v568
  %v570 = vpop.f32.mrf.mxu0
  %v571 = vpop.f32.mrf.mxu0
  %v572 = vadd.f32 0.0, %v571
  %v573 = vpop.f32.mrf.mxu0
  %574 = vmatprep.mubr.bf16.mxu0 0
  %575 = vmatmul.mubr.bf16.gmra.mxu0 %v436
  %v576 = vpop.f32.mrf.mxu0
  %v577 = vadd.f32 0.0, %v576
  %v578 = vpop.f32.mrf.mxu0
  %v579 = vpop.f32.mrf.mxu0
  %v580 = vadd.f32 0.0, %v579
  %v581 = vpop.f32.mrf.mxu0
  %582 = vmatprep.mubr.bf16.mxu0 0
  %583 = vmatmul.mubr.bf16.gmra.mxu0 %v437
  %v584 = vpop.f32.mrf.mxu0
  %v585 = vadd.f32 0.0, %v584
  %v586 = vpop.f32.mrf.mxu0
  %v587 = vpop.f32.mrf.mxu0
  %v588 = vadd.f32 0.0, %v587
  %v589 = vpop.f32.mrf.mxu0
  %590 = vmatprep.mubr.bf16.mxu0 0
  %591 = vmatmul.mubr.bf16.gmra.mxu0 %v438
  %v592 = vpop.f32.mrf.mxu0
  %v593 = vadd.f32 0.0, %v592
  %v594 = vpop.f32.mrf.mxu0
  %v595 = vpop.f32.mrf.mxu0
  %v596 = vadd.f32 0.0, %v595
  %v597 = vpop.f32.mrf.mxu0
  %598 = vmatprep.mubr.bf16.mxu0 0
  %599 = vmatmul.mubr.bf16.gmra.mxu0 %v439
  %v600 = vpop.f32.mrf.mxu0
  %v601 = vadd.f32 0.0, %v600
  %v602 = vpop.f32.mrf.mxu0
  %v603 = vpop.f32.mrf.mxu0
  %v604 = vadd.f32 0.0, %v603
  %v605 = vpop.f32.mrf.mxu0
  %606 = vmatprep.mubr.bf16.mxu0 0
  %607 = vmatmul.mubr.bf16.gmra.mxu0 %v440
  %v608 = vpop.f32.mrf.mxu0
  %v609 = vadd.f32 0.0, %v608
  %v610 = vpop.f32.mrf.mxu0
  %v611 = vpop.f32.mrf.mxu0
  %v612 = vadd.f32 0.0, %v611
  %v613 = vpop.f32.mrf.mxu0
  %614 = vmatprep.mubr.bf16.mxu0 0
  %615 = vmatmul.mubr.bf16.gmra.mxu0 %v441
  %v616 = vpop.f32.mrf.mxu0
  %v617 = vadd.f32 0.0, %v616
  %v618 = vpop.f32.mrf.mxu0
  %v619 = vpop.f32.mrf.mxu0
  %v620 = vadd.f32 0.0, %v619
  %v621 = vpop.f32.mrf.mxu0
  %622 = vmatprep.mubr.bf16.mxu0 0
  %623 = vmatmul.mubr.bf16.gmra.mxu0 %v442
  %v624 = vpop.f32.mrf.mxu0
  %v625 = vadd.f32 0.0, %v624
  %v626 = vpop.f32.mrf.mxu0
  %v627 = vpop.f32.mrf.mxu0
  %v628 = vadd.f32 0.0, %v627
  %v629 = vpop.f32.mrf.mxu0
  %630 = vmatprep.mubr.bf16.mxu0 0
  %631 = vmatmul.mubr.bf16.gmra.mxu0 %v443
  %v632 = vpop.f32.mrf.mxu0
  %v633 = vadd.f32 0.0, %v632
  %v634 = vpop.f32.mrf.mxu0
  %v635 = vpop.f32.mrf.mxu0
  %v636 = vadd.f32 0.0, %v635
  %v637 = vpop.f32.mrf.mxu0
  %638 = vdwg.mxu0
  %v639 = vpack.c.bf16 %v500, %v497
  %v640 = vpack.c.bf16 %v508, %v505
  %v641 = vpack.c.bf16 %v516, %v513
  %v642 = vpack.c.bf16 %v524, %v521
  %v643 = vpack.c.bf16 %v532, %v529
  %v644 = vpack.c.bf16 %v540, %v537
  %v645 = vpack.c.bf16 %v548, %v545
  %v646 = vpack.c.bf16 %v556, %v553
  %v647 = vpack.c.bf16 %v564, %v561
  %v648 = vpack.c.bf16 %v572, %v569
  %v649 = vpack.c.bf16 %v580, %v577
  %v650 = vpack.c.bf16 %v588, %v585
  %v651 = vpack.c.bf16 %v596, %v593
  %v652 = vpack.c.bf16 %v604, %v601
  %v653 = vpack.c.bf16 %v612, %v609
  %v654 = vpack.c.bf16 %v620, %v617
  %v655 = vpack.c.bf16 %v628, %v625
  %v656 = vpack.c.bf16 %v636, %v633
  %v657 = vld [vmem:[%s5] sm:$0xff]
  %v658 = vld [vmem:[%s5 + $0x8] sm:$0xf]
  %v659 = vld [vmem:[%s5 + $0xc] sm:$0xff]
  %v660 = vld [vmem:[%s5 + $0x14] sm:$0xf]
  %v661 = vld [vmem:[%s5 + $0x18] sm:$0xff]
  %v662 = vld [vmem:[%s5 + $0x20] sm:$0xf]
  %v663 = vld [vmem:[%s5 + $0x24] sm:$0xff]
  %v664 = vld [vmem:[%s5 + $0x2c] sm:$0xf]
  %v673 = vunpack.c.l.b16 %v657
  %v674 = vunpack.c.h.b16 %v657
  %v675 = vunpack.c.l.b16 %v658
  %v676 = vunpack.c.l.b16 %v659
  %v677 = vunpack.c.h.b16 %v659
  %v678 = vunpack.c.l.b16 %v660
  %v679 = vunpack.c.l.b16 %v661
  %v680 = vunpack.c.h.b16 %v661
  %v681 = vunpack.c.l.b16 %v662
  %v682 = vunpack.c.l.b16 %v663
  %v683 = vunpack.c.h.b16 %v663
  %v684 = vunpack.c.l.b16 %v664
  %v685 = vpack.c.b16 %v676, %v673
  %v686 = vpack.c.b16 %v677, %v674
  %v687 = vpack.c.b16 %v678, %v675
  %v688 = vpack.c.b16 %v682, %v679
  %v689 = vpack.c.b16 %v683, %v680
  %v690 = vpack.c.b16 %v684, %v681
  %v698 = vsel %vm124, %v639, 0
  %v701 = vsel %vm124, %v640, 0
  %v704 = vsel %vm124, %v641, 0
  %v707 = vsel %vm124, %v642, 0
  %v710 = vsel %vm124, %v643, 0
  %v713 = vsel %vm124, %v644, 0
  %v716 = vsel %vm124, %v645, 0
  %v719 = vsel %vm124, %v646, 0
  %v722 = vsel %vm124, %v647, 0
  %v725 = vsel %vm124, %v648, 0
  %v728 = vsel %vm124, %v649, 0
  %v731 = vsel %vm124, %v650, 0
  %v734 = vsel %vm124, %v651, 0
  %v737 = vsel %vm124, %v652, 0
  %v740 = vsel %vm124, %v653, 0
  %v743 = vsel %vm124, %v654, 0
  %v746 = vsel %vm124, %v655, 0
  %v749 = vsel %vm124, %v656, 0
  %751 = vmatprep.subr.bf16.mxu0 0
  %752 = vmatpush1.bf16.msra.mxu0 0
  %753 = vmatprep.subr.bf16.mxu0 0
  %754 = vmatpush1.bf16.msra.mxu0 0
  %755 = vmatprep.subr.bf16.mxu0 0
  %756 = vmatpush1.bf16.msra.mxu0 0
  %757 = vmatprep.subr.bf16.mxu0 0
  %758 = vmatpush1.bf16.msra.mxu0 0
  %759 = vmatprep.subr.bf16.mxu0 0
  %760 = vmatpush1.bf16.msra.mxu0 0
  %761 = vmatprep.subr.bf16.mxu0 0
  %762 = vmatpush1.bf16.msra.mxu0 0
  %763 = vmatprep.subr.bf16.mxu0 %v689
  %764 = vmatpush1.bf16.msra.mxu0 %v688
  %765 = vmatprep.subr.bf16.mxu0 %v686
  %766 = vmatpush1.bf16.msra.mxu0 %v685
  %767 = vmatprep.subr.bf16.mxu0 0
  %768 = vmatpush2.bf16.msra.mxu0 0
  %769 = vmatprep.subr.bf16.mxu0 0
  %770 = vmatpush2.bf16.msra.mxu0 0
  %771 = vmatprep.subr.bf16.mxu0 0
  %772 = vmatpush2.bf16.msra.mxu0 0
  %773 = vmatprep.subr.bf16.mxu0 0
  %774 = vmatpush2.bf16.msra.mxu0 0
  %775 = vmatprep.subr.bf16.mxu0 0
  %776 = vmatpush2.bf16.msra.mxu0 0
  %777 = vmatprep.subr.bf16.mxu0 0
  %778 = vmatpush2.bf16.msra.mxu0 0
  %779 = vmatprep.subr.bf16.mxu0 0
  %780 = vmatpush2.bf16.msra.mxu0 0
  %781 = vmatprep.subr.bf16.mxu0 0
  %782 = vmatpush2.bf16.msra.mxu0 0
  %783 = vmatprep.mubr.bf16.mxu0 0
  %784 = vmatmul.mubr.bf16.gmra.mxu0 %v698
  %v785 = vpop.f32.mrf.mxu0
  %v786 = vadd.f32 0.0, %v785
  %v787 = vpop.f32.mrf.mxu0
  %v788 = vpop.f32.mrf.mxu0
  %v789 = vadd.f32 0.0, %v788
  %v790 = vpop.f32.mrf.mxu0
  %791 = vmatprep.mubr.bf16.mxu0 0
  %792 = vmatmul.mubr.bf16.gmra.mxu0 %v701
  %v793 = vpop.f32.mrf.mxu0
  %v794 = vadd.f32 0.0, %v793
  %v795 = vpop.f32.mrf.mxu0
  %v796 = vpop.f32.mrf.mxu0
  %v797 = vadd.f32 0.0, %v796
  %v798 = vpop.f32.mrf.mxu0
  %799 = vmatprep.mubr.bf16.mxu0 0
  %800 = vmatmul.mubr.bf16.gmra.mxu0 %v704
  %v801 = vpop.f32.mrf.mxu0
  %v802 = vadd.f32 0.0, %v801
  %v803 = vpop.f32.mrf.mxu0
  %v804 = vpop.f32.mrf.mxu0
  %v805 = vadd.f32 0.0, %v804
  %v806 = vpop.f32.mrf.mxu0
  %807 = vmatprep.mubr.bf16.mxu0 0
  %808 = vmatmul.mubr.bf16.gmra.mxu0 %v707
  %v809 = vpop.f32.mrf.mxu0
  %v810 = vadd.f32 0.0, %v809
  %v811 = vpop.f32.mrf.mxu0
  %v812 = vpop.f32.mrf.mxu0
  %v813 = vadd.f32 0.0, %v812
  %v814 = vpop.f32.mrf.mxu0
  %815 = vmatprep.mubr.bf16.mxu0 0
  %816 = vmatmul.mubr.bf16.gmra.mxu0 %v710
  %v817 = vpop.f32.mrf.mxu0
  %v818 = vadd.f32 0.0, %v817
  %v819 = vpop.f32.mrf.mxu0
  %v820 = vpop.f32.mrf.mxu0
  %v821 = vadd.f32 0.0, %v820
  %v822 = vpop.f32.mrf.mxu0
  %823 = vmatprep.mubr.bf16.mxu0 0
  %824 = vmatmul.mubr.bf16.gmra.mxu0 %v713
  %v825 = vpop.f32.mrf.mxu0
  %v826 = vadd.f32 0.0, %v825
  %v827 = vpop.f32.mrf.mxu0
  %v828 = vpop.f32.mrf.mxu0
  %v829 = vadd.f32 0.0, %v828
  %v830 = vpop.f32.mrf.mxu0
  %831 = vmatprep.mubr.bf16.mxu0 0
  %832 = vmatmul.mubr.bf16.gmra.mxu0 %v716
  %v833 = vpop.f32.mrf.mxu0
  %v834 = vadd.f32 0.0, %v833
  %v835 = vpop.f32.mrf.mxu0
  %v836 = vpop.f32.mrf.mxu0
  %v837 = vadd.f32 0.0, %v836
  %v838 = vpop.f32.mrf.mxu0
  %839 = vmatprep.mubr.bf16.mxu0 0
  %840 = vmatmul.mubr.bf16.gmra.mxu0 %v719
  %v841 = vpop.f32.mrf.mxu0
  %v842 = vadd.f32 0.0, %v841
  %v843 = vpop.f32.mrf.mxu0
  %v844 = vpop.f32.mrf.mxu0
  %v845 = vadd.f32 0.0, %v844
  %v846 = vpop.f32.mrf.mxu0
  %847 = vmatprep.mubr.bf16.mxu0 0
  %848 = vmatmul.mubr.bf16.gmra.mxu0 %v722
  %v849 = vpop.f32.mrf.mxu0
  %v850 = vpop.f32.mrf.mxu0
  %v851 = vadd.f32 0.0, %v850
  %v852 = vpop.f32.mrf.mxu0
  %v853 = vpop.f32.mrf.mxu0
  %v854 = vadd.f32 0.0, %v853
  %855 = vmatprep.mubr.bf16.mxu0 0
  %856 = vmatmul.mubr.bf16.gmra.mxu0 %v725
  %v857 = vpop.f32.mrf.mxu0
  %v858 = vpop.f32.mrf.mxu0
  %v859 = vadd.f32 0.0, %v858
  %v860 = vpop.f32.mrf.mxu0
  %v861 = vpop.f32.mrf.mxu0
  %v862 = vadd.f32 0.0, %v861
  %863 = vmatprep.mubr.bf16.mxu0 0
  %864 = vmatmul.mubr.bf16.gmra.mxu0 %v728
  %v865 = vpop.f32.mrf.mxu0
  %v866 = vpop.f32.mrf.mxu0
  %v867 = vadd.f32 0.0, %v866
  %v868 = vpop.f32.mrf.mxu0
  %v869 = vpop.f32.mrf.mxu0
  %v870 = vadd.f32 0.0, %v869
  %871 = vmatprep.mubr.bf16.mxu0 0
  %872 = vmatmul.mubr.bf16.gmra.mxu0 %v731
  %v873 = vpop.f32.mrf.mxu0
  %v874 = vpop.f32.mrf.mxu0
  %v875 = vadd.f32 0.0, %v874
  %v876 = vpop.f32.mrf.mxu0
  %v877 = vpop.f32.mrf.mxu0
  %v878 = vadd.f32 0.0, %v877
  %879 = vmatprep.mubr.bf16.mxu0 0
  %880 = vmatmul.mubr.bf16.gmra.mxu0 %v734
  %v881 = vpop.f32.mrf.mxu0
  %v882 = vpop.f32.mrf.mxu0
  %v883 = vadd.f32 0.0, %v882
  %v884 = vpop.f32.mrf.mxu0
  %v885 = vpop.f32.mrf.mxu0
  %v886 = vadd.f32 0.0, %v885
  %887 = vmatprep.mubr.bf16.mxu0 0
  %888 = vmatmul.mubr.bf16.gmra.mxu0 %v737
  %v889 = vpop.f32.mrf.mxu0
  %v890 = vpop.f32.mrf.mxu0
  %v891 = vadd.f32 0.0, %v890
  %v892 = vpop.f32.mrf.mxu0
  %v893 = vpop.f32.mrf.mxu0
  %v894 = vadd.f32 0.0, %v893
  %895 = vmatprep.mubr.bf16.mxu0 0
  %896 = vmatmul.mubr.bf16.gmra.mxu0 %v740
  %v897 = vpop.f32.mrf.mxu0
  %v898 = vpop.f32.mrf.mxu0
  %v899 = vadd.f32 0.0, %v898
  %v900 = vpop.f32.mrf.mxu0
  %v901 = vpop.f32.mrf.mxu0
  %v902 = vadd.f32 0.0, %v901
  %903 = vmatprep.mubr.bf16.mxu0 0
  %904 = vmatmul.mubr.bf16.gmra.mxu0 %v743
  %v905 = vpop.f32.mrf.mxu0
  %v906 = vpop.f32.mrf.mxu0
  %v907 = vadd.f32 0.0, %v906
  %v908 = vpop.f32.mrf.mxu0
  %v909 = vpop.f32.mrf.mxu0
  %v910 = vadd.f32 0.0, %v909
  %911 = vmatprep.mubr.bf16.mxu0 0
  %912 = vmatmul.mubr.bf16.gmra.mxu0 %v746
  %v913 = vpop.f32.mrf.mxu0
  %v914 = vpop.f32.mrf.mxu0
  %v915 = vpop.f32.mrf.mxu0
  %v916 = vpop.f32.mrf.mxu0
  %917 = vmatprep.mubr.bf16.mxu0 0
  %918 = vmatmul.mubr.bf16.gmra.mxu0 %v749
  %v919 = vpop.f32.mrf.mxu0
  %v920 = vpop.f32.mrf.mxu0
  %v921 = vpop.f32.mrf.mxu0
  %v922 = vpop.f32.mrf.mxu0
  %923 = vdwg.mxu0
  %924 = vmatprep.subr.bf16.mxu0 0
  %925 = vmatpush1.bf16.msra.mxu0 0
  %926 = vmatprep.subr.bf16.mxu0 0
  %927 = vmatpush1.bf16.msra.mxu0 0
  %928 = vmatprep.subr.bf16.mxu0 0
  %929 = vmatpush1.bf16.msra.mxu0 0
  %930 = vmatprep.subr.bf16.mxu0 0
  %931 = vmatpush1.bf16.msra.mxu0 0
  %932 = vmatprep.subr.bf16.mxu0 0
  %933 = vmatpush1.bf16.msra.mxu0 0
  %934 = vmatprep.subr.bf16.mxu0 0
  %935 = vmatpush1.bf16.msra.mxu0 0
  %936 = vmatprep.subr.bf16.mxu0 0
  %937 = vmatpush1.bf16.msra.mxu0 %v690
  %938 = vmatprep.subr.bf16.mxu0 0
  %939 = vmatpush1.bf16.msra.mxu0 %v687
  %940 = vmatprep.subr.bf16.mxu0 0
  %941 = vmatpush2.bf16.msra.mxu0 0
  %942 = vmatprep.subr.bf16.mxu0 0
  %943 = vmatpush2.bf16.msra.mxu0 0
  %944 = vmatprep.subr.bf16.mxu0 0
  %945 = vmatpush2.bf16.msra.mxu0 0
  %946 = vmatprep.subr.bf16.mxu0 0
  %947 = vmatpush2.bf16.msra.mxu0 0
  %948 = vmatprep.subr.bf16.mxu0 0
  %949 = vmatpush2.bf16.msra.mxu0 0
  %950 = vmatprep.subr.bf16.mxu0 0
  %951 = vmatpush2.bf16.msra.mxu0 0
  %952 = vmatprep.subr.bf16.mxu0 0
  %953 = vmatpush2.bf16.msra.mxu0 0
  %954 = vmatprep.subr.bf16.mxu0 0
  %955 = vmatpush2.bf16.msra.mxu0 0
  %956 = vmatprep.mubr.bf16.mxu0 0
  %957 = vmatmul.mubr.bf16.gmra.mxu0 %v698
  %v958 = vpop.f32.mrf.mxu0
  %v959 = vpop.f32.mrf.mxu0
  %v960 = vpop.f32.mrf.mxu0
  %v961 = vpop.f32.mrf.mxu0
  %962 = vmatprep.mubr.bf16.mxu0 0
  %963 = vmatmul.mubr.bf16.gmra.mxu0 %v701
  %v964 = vpop.f32.mrf.mxu0
  %v965 = vpop.f32.mrf.mxu0
  %v966 = vpop.f32.mrf.mxu0
  %v967 = vpop.f32.mrf.mxu0
  %968 = vmatprep.mubr.bf16.mxu0 0
  %969 = vmatmul.mubr.bf16.gmra.mxu0 %v704
  %v970 = vpop.f32.mrf.mxu0
  %v971 = vpop.f32.mrf.mxu0
  %v972 = vpop.f32.mrf.mxu0
  %v973 = vpop.f32.mrf.mxu0
  %974 = vmatprep.mubr.bf16.mxu0 0
  %975 = vmatmul.mubr.bf16.gmra.mxu0 %v707
  %v976 = vpop.f32.mrf.mxu0
  %v977 = vpop.f32.mrf.mxu0
  %v978 = vpop.f32.mrf.mxu0
  %v979 = vpop.f32.mrf.mxu0
  %980 = vmatprep.mubr.bf16.mxu0 0
  %981 = vmatmul.mubr.bf16.gmra.mxu0 %v710
  %v982 = vpop.f32.mrf.mxu0
  %v983 = vpop.f32.mrf.mxu0
  %v984 = vpop.f32.mrf.mxu0
  %v985 = vpop.f32.mrf.mxu0
  %986 = vmatprep.mubr.bf16.mxu0 0
  %987 = vmatmul.mubr.bf16.gmra.mxu0 %v713
  %v988 = vpop.f32.mrf.mxu0
  %v989 = vpop.f32.mrf.mxu0
  %v990 = vpop.f32.mrf.mxu0
  %v991 = vpop.f32.mrf.mxu0
  %992 = vmatprep.mubr.bf16.mxu0 0
  %993 = vmatmul.mubr.bf16.gmra.mxu0 %v716
  %v994 = vpop.f32.mrf.mxu0
  %v995 = vpop.f32.mrf.mxu0
  %v996 = vpop.f32.mrf.mxu0
  %v997 = vpop.f32.mrf.mxu0
  %998 = vmatprep.mubr.bf16.mxu0 0
  %999 = vmatmul.mubr.bf16.gmra.mxu0 %v719
  %v1000 = vpop.f32.mrf.mxu0
  %v1001 = vpop.f32.mrf.mxu0
  %v1002 = vpop.f32.mrf.mxu0
  %v1003 = vpop.f32.mrf.mxu0
  %1004 = vmatprep.mubr.bf16.mxu0 0
  %1005 = vmatmul.mubr.bf16.gmra.mxu0 %v722
  %v1006 = vpop.f32.mrf.mxu0
  %v1007 = vpop.f32.mrf.mxu0
  %v1008 = vpop.f32.mrf.mxu0
  %v1009 = vpop.f32.mrf.mxu0
  %1010 = vmatprep.mubr.bf16.mxu0 0
  %1011 = vmatmul.mubr.bf16.gmra.mxu0 %v725
  %v1012 = vpop.f32.mrf.mxu0
  %v1013 = vpop.f32.mrf.mxu0
  %v1014 = vpop.f32.mrf.mxu0
  %v1015 = vpop.f32.mrf.mxu0
  %1016 = vmatprep.mubr.bf16.mxu0 0
  %1017 = vmatmul.mubr.bf16.gmra.mxu0 %v728
  %v1018 = vpop.f32.mrf.mxu0
  %v1019 = vpop.f32.mrf.mxu0
  %v1020 = vpop.f32.mrf.mxu0
  %v1021 = vpop.f32.mrf.mxu0
  %1022 = vmatprep.mubr.bf16.mxu0 0
  %1023 = vmatmul.mubr.bf16.gmra.mxu0 %v731
  %v1024 = vpop.f32.mrf.mxu0
  %v1025 = vpop.f32.mrf.mxu0
  %v1026 = vpop.f32.mrf.mxu0
  %v1027 = vpop.f32.mrf.mxu0
  %1028 = vmatprep.mubr.bf16.mxu0 0
  %1029 = vmatmul.mubr.bf16.gmra.mxu0 %v734
  %v1030 = vpop.f32.mrf.mxu0
  %v1031 = vpop.f32.mrf.mxu0
  %v1032 = vpop.f32.mrf.mxu0
  %v1033 = vpop.f32.mrf.mxu0
  %1034 = vmatprep.mubr.bf16.mxu0 0
  %1035 = vmatmul.mubr.bf16.gmra.mxu0 %v737
  %v1036 = vpop.f32.mrf.mxu0
  %v1037 = vpop.f32.mrf.mxu0
  %v1038 = vpop.f32.mrf.mxu0
  %v1039 = vpop.f32.mrf.mxu0
  %1040 = vmatprep.mubr.bf16.mxu0 0
  %1041 = vmatmul.mubr.bf16.gmra.mxu0 %v740
  %v1042 = vpop.f32.mrf.mxu0
  %v1043 = vpop.f32.mrf.mxu0
  %v1044 = vpop.f32.mrf.mxu0
  %v1045 = vpop.f32.mrf.mxu0
  %1046 = vmatprep.mubr.bf16.mxu0 0
  %1047 = vmatmul.mubr.bf16.gmra.mxu0 %v743
  %v1048 = vpop.f32.mrf.mxu0
  %v1049 = vpop.f32.mrf.mxu0
  %v1050 = vpop.f32.mrf.mxu0
  %v1051 = vpop.f32.mrf.mxu0
  %1052 = vmatprep.mubr.bf16.mxu0 0
  %1053 = vmatmul.mubr.bf16.gmra.mxu0 %v746
  %v1054 = vpop.f32.mrf.mxu0
  %v1055 = vadd.f32 0.0, %v1054
  %v1056 = vpop.f32.mrf.mxu0
  %v1057 = vpop.f32.mrf.mxu0
  %v1058 = vadd.f32 0.0, %v1057
  %v1059 = vpop.f32.mrf.mxu0
  %1060 = vmatprep.mubr.bf16.mxu0 0
  %1061 = vmatmul.mubr.bf16.gmra.mxu0 %v749
  %v1062 = vpop.f32.mrf.mxu0
  %v1063 = vadd.f32 0.0, %v1062
  %v1064 = vpop.f32.mrf.mxu0
  %v1065 = vpop.f32.mrf.mxu0
  %v1066 = vadd.f32 0.0, %v1065
  %v1067 = vpop.f32.mrf.mxu0
  %1068 = vdwg.mxu0
  %1073 = vrot.lane.b32.xlu0 %v802, 96
  %v1074 = vpop.permute.xlu0 %1073
  %1075 = vrot.lane.b32.xlu0 %v805, 96
  %v1076 = vpop.permute.xlu0 %1075
  %1077 = vrot.lane.b32.xlu0 %v810, 96
  %v1078 = vpop.permute.xlu0 %1077
  %1079 = vrot.lane.b32.xlu0 %v813, 96
  %v1080 = vpop.permute.xlu0 %1079
  %v1085 = vadd.f32 %v786, %v1074
  %v1086 = vadd.f32 %v789, %v1076
  %v1087 = vadd.f32 %v794, %v1078
  %v1088 = vadd.f32 %v797, %v1080
  %1093 = vrot.lane.b32.xlu0 %v818, 64
  %v1094 = vpop.permute.xlu0 %1093
  %1095 = vrot.lane.b32.xlu0 %v821, 64
  %v1096 = vpop.permute.xlu0 %1095
  %1097 = vrot.lane.b32.xlu0 %v826, 64
  %v1098 = vpop.permute.xlu0 %1097
  %1099 = vrot.lane.b32.xlu0 %v829, 64
  %v1100 = vpop.permute.xlu0 %1099
  %v1105 = vadd.f32 %v1085, %v1094
  %v1106 = vadd.f32 %v1086, %v1096
  %v1107 = vadd.f32 %v1087, %v1098
  %v1108 = vadd.f32 %v1088, %v1100
  %1113 = vrot.lane.b32.xlu0 %v834, 32
  %v1114 = vpop.permute.xlu0 %1113
  %1115 = vrot.lane.b32.xlu0 %v837, 32
  %v1116 = vpop.permute.xlu0 %1115
  %1117 = vrot.lane.b32.xlu0 %v842, 32
  %v1118 = vpop.permute.xlu0 %1117
  %1119 = vrot.lane.b32.xlu0 %v845, 32
  %v1120 = vpop.permute.xlu0 %1119
  %v1125 = vadd.f32 %v1105, %v1114
  %v1126 = vadd.f32 %v1106, %v1116
  %v1127 = vadd.f32 %v1107, %v1118
  %v1128 = vadd.f32 %v1108, %v1120
  %v1129 = vadd.f32 %v1125, %v851
  %v1130 = vadd.f32 %v1126, %v854
  %v1131 = vadd.f32 %v1127, %v859
  %v1132 = vadd.f32 %v1128, %v862
  %1137 = vrot.lane.b32.xlu0 %v867, 96
  %v1138 = vpop.permute.xlu0 %1137
  %1139 = vrot.lane.b32.xlu0 %v870, 96
  %v1140 = vpop.permute.xlu0 %1139
  %1141 = vrot.lane.b32.xlu0 %v875, 96
  %v1142 = vpop.permute.xlu0 %1141
  %1143 = vrot.lane.b32.xlu0 %v878, 96
  %v1144 = vpop.permute.xlu0 %1143
  %v1149 = vadd.f32 %v1129, %v1138
  %v1150 = vadd.f32 %v1130, %v1140
  %v1151 = vadd.f32 %v1131, %v1142
  %v1152 = vadd.f32 %v1132, %v1144
  %1157 = vrot.lane.b32.xlu0 %v883, 64
  %v1158 = vpop.permute.xlu0 %1157
  %1159 = vrot.lane.b32.xlu0 %v886, 64
  %v1160 = vpop.permute.xlu0 %1159
  %1161 = vrot.lane.b32.xlu0 %v891, 64
  %v1162 = vpop.permute.xlu0 %1161
  %1163 = vrot.lane.b32.xlu0 %v894, 64
  %v1164 = vpop.permute.xlu0 %1163
  %v1169 = vadd.f32 %v1149, %v1158
  %v1170 = vadd.f32 %v1150, %v1160
  %v1171 = vadd.f32 %v1151, %v1162
  %v1172 = vadd.f32 %v1152, %v1164
  %1177 = vrot.lane.b32.xlu0 %v899, 32
  %v1178 = vpop.permute.xlu0 %1177
  %1179 = vrot.lane.b32.xlu0 %v902, 32
  %v1180 = vpop.permute.xlu0 %1179
  %1181 = vrot.lane.b32.xlu0 %v907, 32
  %v1182 = vpop.permute.xlu0 %1181
  %1183 = vrot.lane.b32.xlu0 %v910, 32
  %v1184 = vpop.permute.xlu0 %1183
  %v1189 = vadd.f32 %v1169, %v1178
  %v1190 = vadd.f32 %v1170, %v1180
  %v1191 = vadd.f32 %v1171, %v1182
  %v1192 = vadd.f32 %v1172, %v1184
  %v1193 = vadd.f32 %v1189, %v1055
  %v1194 = vadd.f32 %v1190, %v1058
  %v1195 = vadd.f32 %v1191, %v1063
  %v1196 = vadd.f32 %v1192, %v1066
  %v1197 = vld [vmem:[%s6] sm:$0x1]
  %v1199 = vlaneseq
  %v1200 = vshrl.u32 %v1199, 7
  %v1201 = vsub.s32 0, %v1200
  %v1202 = vrot.slane %v1197, %v1201
  %v1204 = vadd.f32 %v1193, %v1202
  %v1205 = vadd.f32 %v1194, %v1202
  %v1206 = vadd.f32 %v1195, %v1202
  %v1207 = vadd.f32 %v1196, %v1202
  %v1208 = vmax.f32 %v1204, 0.0
  %v1209 = vmax.f32 %v1205, 0.0
  %v1210 = vmax.f32 %v1206, 0.0
  %v1211 = vmax.f32 %v1207, 0.0
  %v1212 = vpack.c.bf16 %v1209, %v1208
  %v1213 = vpack.c.bf16 %v1211, %v1210
  %v1215 = vsel %vm124, %v1212, %v647
  %v1217 = vsel %vm124, %v1213, %v648
  %v1218 = vld [vmem:[%s7] sm:$0xf]
  %v1219 = vld [vmem:[%s7 + $0x4] sm:$0xf]
  %v1220 = vld [vmem:[%s7 + $0x8] sm:$0xf]
  %v1221 = vld [vmem:[%s7 + $0xc] sm:$0xf]
  %v1222 = vld [vmem:[%s7 + $0x10] sm:$0xf]
  %v1223 = vld [vmem:[%s7 + $0x14] sm:$0xf]
  %v1224 = vld [vmem:[%s7 + $0x18] sm:$0xf]
  %v1225 = vld [vmem:[%s7 + $0x1c] sm:$0xf]
  %v1226 = vld [vmem:[%s8] sm:$0x1]
  %v1228 = vlaneseq
  %v1229 = vshrl.u32 %v1228, 7
  %v1230 = vsub.s32 0, %v1229
  %v1231 = vrot.slane %v1226, %v1230
  %v1241 = vunpack.c.l.b16 %v1218
  %v1242 = vunpack.c.l.b16 %v1219
  %v1243 = vunpack.c.l.b16 %v1220
  %v1244 = vunpack.c.l.b16 %v1221
  %v1245 = vunpack.c.l.b16 %v1222
  %v1246 = vunpack.c.l.b16 %v1223
  %v1247 = vunpack.c.l.b16 %v1224
  %v1248 = vunpack.c.l.b16 %v1225
  %v1249 = vpack.c.b16 %v1242, %v1241
  %v1250 = vpack.c.b16 %v1244, %v1243
  %v1251 = vpack.c.b16 %v1246, %v1245
  %v1252 = vpack.c.b16 %v1248, %v1247
  %vm1257 = vcmask 523264
  %v1258 = vsel %vm1257, %v1215, 0
  %v1260 = vsel %vm1257, %v1217, 0
  %1262 = vmatprep.subr.bf16.mxu0 0
  %1263 = vmatpush1.bf16.msra.mxu0 0
  %1264 = vmatprep.subr.bf16.mxu0 0
  %1265 = vmatpush1.bf16.msra.mxu0 0
  %1266 = vmatprep.subr.bf16.mxu0 0
  %1267 = vmatpush1.bf16.msra.mxu0 0
  %1268 = vmatprep.subr.bf16.mxu0 0
  %1269 = vmatpush1.bf16.msra.mxu0 0
  %1270 = vmatprep.subr.bf16.mxu0 0
  %1271 = vmatpush1.bf16.msra.mxu0 %v1252
  %1272 = vmatprep.subr.bf16.mxu0 0
  %1273 = vmatpush1.bf16.msra.mxu0 %v1251
  %1274 = vmatprep.subr.bf16.mxu0 0
  %1275 = vmatpush1.bf16.msra.mxu0 %v1250
  %1276 = vmatprep.subr.bf16.mxu0 0
  %1277 = vmatpush1.bf16.msra.mxu0 %v1249
  %1278 = vmatprep.subr.bf16.mxu0 0
  %1279 = vmatpush2.bf16.msra.mxu0 0
  %1280 = vmatprep.subr.bf16.mxu0 0
  %1281 = vmatpush2.bf16.msra.mxu0 0
  %1282 = vmatprep.subr.bf16.mxu0 0
  %1283 = vmatpush2.bf16.msra.mxu0 0
  %1284 = vmatprep.subr.bf16.mxu0 0
  %1285 = vmatpush2.bf16.msra.mxu0 0
  %1286 = vmatprep.subr.bf16.mxu0 0
  %1287 = vmatpush2.bf16.msra.mxu0 0
  %1288 = vmatprep.subr.bf16.mxu0 0
  %1289 = vmatpush2.bf16.msra.mxu0 0
  %1290 = vmatprep.subr.bf16.mxu0 0
  %1291 = vmatpush2.bf16.msra.mxu0 0
  %1292 = vmatprep.subr.bf16.mxu0 0
  %1293 = vmatpush2.bf16.msra.mxu0 0
  %1294 = vmatprep.mubr.bf16.mxu0 0
  %1295 = vmatmul.mubr.bf16.gmra.mxu0 %v1258
  %v1296 = vpop.f32.mrf.mxu0
  %v1297 = vadd.f32 %v1231, %v1296
  %v1298 = vpop.f32.mrf.mxu0
  %v1299 = vpop.f32.mrf.mxu0
  %v1300 = vadd.f32 %v1231, %v1299
  %v1301 = vpop.f32.mrf.mxu0
  %1302 = vmatprep.mubr.bf16.mxu0 0
  %1303 = vmatmul.mubr.bf16.gmra.mxu0 %v1260
  %v1304 = vpop.f32.mrf.mxu0
  %v1305 = vadd.f32 %v1231, %v1304
  %v1306 = vpop.f32.mrf.mxu0
  %v1307 = vpop.f32.mrf.mxu0
  %v1308 = vadd.f32 %v1231, %v1307
  %v1309 = vpop.f32.mrf.mxu0
  %1310 = vdwg.mxu0
  %v1311 = vmax.f32 %v1297, 0.0
  %v1312 = vmax.f32 %v1300, 0.0
  %v1313 = vmax.f32 %v1305, 0.0
  %v1314 = vmax.f32 %v1308, 0.0
  %v1315 = vpack.c.bf16 %v1312, %v1311
  %v1316 = vpack.c.bf16 %v1314, %v1313
  %v1317 = vld [vmem:[%s2] sm:$0x1]
  %v1319 = vsel %vm124, %v1317, 0
  %1321 = vmatprep.subr.bf16.mxu0 0
  %1322 = vmatpush1.bf16.msra.mxu0 0
  %1323 = vmatprep.subr.bf16.mxu0 0
  %1324 = vmatpush1.bf16.msra.mxu0 0
  %1325 = vmatprep.subr.bf16.mxu0 0
  %1326 = vmatpush1.bf16.msra.mxu0 0
  %1327 = vmatprep.subr.bf16.mxu0 0
  %1328 = vmatpush1.bf16.msra.mxu0 0
  %1329 = vmatprep.subr.bf16.mxu0 0
  %1330 = vmatpush1.bf16.msra.mxu0 0
  %1331 = vmatprep.subr.bf16.mxu0 0
  %1332 = vmatpush1.bf16.msra.mxu0 0
  %1333 = vmatprep.subr.bf16.mxu0 0
  %1334 = vmatpush1.bf16.msra.mxu0 %v1316
  %1335 = vmatprep.subr.bf16.mxu0 0
  %1336 = vmatpush1.bf16.msra.mxu0 %v1315
  %1337 = vmatprep.subr.bf16.mxu0 0
  %1338 = vmatpush2.bf16.msra.mxu0 0
  %1339 = vmatprep.subr.bf16.mxu0 0
  %1340 = vmatpush2.bf16.msra.mxu0 0
  %1341 = vmatprep.subr.bf16.mxu0 0
  %1342 = vmatpush2.bf16.msra.mxu0 0
  %1343 = vmatprep.subr.bf16.mxu0 0
  %1344 = vmatpush2.bf16.msra.mxu0 0
  %1345 = vmatprep.subr.bf16.mxu0 0
  %1346 = vmatpush2.bf16.msra.mxu0 0
  %1347 = vmatprep.subr.bf16.mxu0 0
  %1348 = vmatpush2.bf16.msra.mxu0 0
  %1349 = vmatprep.subr.bf16.mxu0 0
  %1350 = vmatpush2.bf16.msra.mxu0 0
  %1351 = vmatprep.subr.bf16.mxu0 0
  %1352 = vmatpush2.bf16.msra.mxu0 0
  %1353 = vmatprep.mubr.bf16.mxu0 0
  %1354 = vmatmul.mubr.bf16.gmra.mxu0 %v1319
  %v1355 = vpop.f32.mrf.mxu0
  %v1356 = vadd.f32 0.0, %v1355
  %v1357 = vpop.f32.mrf.mxu0
  %v1358 = vpop.f32.mrf.mxu0
  %v1359 = vpop.f32.mrf.mxu0
  %1360 = vdwg.mxu0
  %v1361 = vpack.c.bf16 %v1356, %v1356
  %v1362 = vld [vmem:[%s9] sm:$0xf]
  %v1363 = vld [vmem:[%s9 + $0x4] sm:$0xf]
  %v1364 = vld [vmem:[%s9 + $0x8] sm:$0xf]
  %v1365 = vld [vmem:[%s9 + $0xc] sm:$0xf]
  %v1366 = vld [vmem:[%s9 + $0x10] sm:$0xf]
  %v1367 = vld [vmem:[%s9 + $0x14] sm:$0xf]
  %v1368 = vld [vmem:[%s9 + $0x18] sm:$0xf]
  %v1369 = vld [vmem:[%s9 + $0x1c] sm:$0xf]
  %v1370 = vld [vmem:[%s10] sm:$0x1]
  %v1372 = vlaneseq
  %v1373 = vshrl.u32 %v1372, 7
  %v1374 = vsub.s32 0, %v1373
  %v1375 = vrot.slane %v1370, %v1374
  %v1385 = vunpack.c.l.b16 %v1362
  %v1386 = vunpack.c.l.b16 %v1363
  %v1387 = vunpack.c.l.b16 %v1364
  %v1388 = vunpack.c.l.b16 %v1365
  %v1389 = vunpack.c.l.b16 %v1366
  %v1390 = vunpack.c.l.b16 %v1367
  %v1391 = vunpack.c.l.b16 %v1368
  %v1392 = vunpack.c.l.b16 %v1369
  %v1393 = vpack.c.b16 %v1386, %v1385
  %v1394 = vpack.c.b16 %v1388, %v1387
  %v1395 = vpack.c.b16 %v1390, %v1389
  %v1396 = vpack.c.b16 %v1392, %v1391
  %v1402 = vsel %vm1257, %v1361, 0
  %1404 = vmatprep.subr.bf16.mxu0 0
  %1405 = vmatpush1.bf16.msra.mxu0 0
  %1406 = vmatprep.subr.bf16.mxu0 0
  %1407 = vmatpush1.bf16.msra.mxu0 0
  %1408 = vmatprep.subr.bf16.mxu0 0
  %1409 = vmatpush1.bf16.msra.mxu0 0
  %1410 = vmatprep.subr.bf16.mxu0 0
  %1411 = vmatpush1.bf16.msra.mxu0 0
  %1412 = vmatprep.subr.bf16.mxu0 0
  %1413 = vmatpush1.bf16.msra.mxu0 %v1396
  %1414 = vmatprep.subr.bf16.mxu0 0
  %1415 = vmatpush1.bf16.msra.mxu0 %v1395
  %1416 = vmatprep.subr.bf16.mxu0 0
  %1417 = vmatpush1.bf16.msra.mxu0 %v1394
  %1418 = vmatprep.subr.bf16.mxu0 0
  %1419 = vmatpush1.bf16.msra.mxu0 %v1393
  %1420 = vmatprep.subr.bf16.mxu0 0
  %1421 = vmatpush2.bf16.msra.mxu0 0
  %1422 = vmatprep.subr.bf16.mxu0 0
  %1423 = vmatpush2.bf16.msra.mxu0 0
  %1424 = vmatprep.subr.bf16.mxu0 0
  %1425 = vmatpush2.bf16.msra.mxu0 0
  %1426 = vmatprep.subr.bf16.mxu0 0
  %1427 = vmatpush2.bf16.msra.mxu0 0
  %1428 = vmatprep.subr.bf16.mxu0 0
  %1429 = vmatpush2.bf16.msra.mxu0 0
  %1430 = vmatprep.subr.bf16.mxu0 0
  %1431 = vmatpush2.bf16.msra.mxu0 0
  %1432 = vmatprep.subr.bf16.mxu0 0
  %1433 = vmatpush2.bf16.msra.mxu0 0
  %1434 = vmatprep.subr.bf16.mxu0 0
  %1435 = vmatpush2.bf16.msra.mxu0 0
  %1436 = vmatprep.mubr.bf16.mxu0 0
  %1437 = vmatmul.mubr.bf16.gmra.mxu0 %v1402
  %v1438 = vpop.f32.mrf.mxu0
  %v1439 = vadd.f32 %v1375, %v1438
  %v1440 = vpop.f32.mrf.mxu0
  %v1441 = vpop.f32.mrf.mxu0
  %v1442 = vpop.f32.mrf.mxu0
  %1443 = vdwg.mxu0
  %v1444 = vmax.f32 %v1439, 0.0
  %v1445 = vpack.c.bf16 %v1444, %v1444
  %v1446 = vld [vmem:[%s11] sm:$0xf]
  %v1447 = vld [vmem:[%s11 + $0x4] sm:$0xf]
  %v1448 = vld [vmem:[%s11 + $0x8] sm:$0xf]
  %v1449 = vld [vmem:[%s11 + $0xc] sm:$0xf]
  %v1450 = vld [vmem:[%s11 + $0x10] sm:$0xf]
  %v1451 = vld [vmem:[%s11 + $0x14] sm:$0xf]
  %v1452 = vld [vmem:[%s11 + $0x18] sm:$0xf]
  %v1453 = vld [vmem:[%s11 + $0x1c] sm:$0xf]
  %v1454 = vld [vmem:[%s12] sm:$0x1]
  %v1456 = vlaneseq
  %v1457 = vshrl.u32 %v1456, 7
  %v1458 = vsub.s32 0, %v1457
  %v1459 = vrot.slane %v1454, %v1458
  %v1469 = vunpack.c.l.b16 %v1446
  %v1470 = vunpack.c.l.b16 %v1447
  %v1471 = vunpack.c.l.b16 %v1448
  %v1472 = vunpack.c.l.b16 %v1449
  %v1473 = vunpack.c.l.b16 %v1450
  %v1474 = vunpack.c.l.b16 %v1451
  %v1475 = vunpack.c.l.b16 %v1452
  %v1476 = vunpack.c.l.b16 %v1453
  %v1477 = vpack.c.b16 %v1470, %v1469
  %v1478 = vpack.c.b16 %v1472, %v1471
  %v1479 = vpack.c.b16 %v1474, %v1473
  %v1480 = vpack.c.b16 %v1476, %v1475
  %v1486 = vsel %vm1257, %v1445, 0
  %1488 = vmatprep.subr.bf16.mxu0 0
  %1489 = vmatpush1.bf16.msra.mxu0 0
  %1490 = vmatprep.subr.bf16.mxu0 0
  %1491 = vmatpush1.bf16.msra.mxu0 0
  %1492 = vmatprep.subr.bf16.mxu0 0
  %1493 = vmatpush1.bf16.msra.mxu0 0
  %1494 = vmatprep.subr.bf16.mxu0 0
  %1495 = vmatpush1.bf16.msra.mxu0 0
  %1496 = vmatprep.subr.bf16.mxu0 0
  %1497 = vmatpush1.bf16.msra.mxu0 %v1480
  %1498 = vmatprep.subr.bf16.mxu0 0
  %1499 = vmatpush1.bf16.msra.mxu0 %v1479
  %1500 = vmatprep.subr.bf16.mxu0 0
  %1501 = vmatpush1.bf16.msra.mxu0 %v1478
  %1502 = vmatprep.subr.bf16.mxu0 0
  %1503 = vmatpush1.bf16.msra.mxu0 %v1477
  %1504 = vmatprep.subr.bf16.mxu0 0
  %1505 = vmatpush2.bf16.msra.mxu0 0
  %1506 = vmatprep.subr.bf16.mxu0 0
  %1507 = vmatpush2.bf16.msra.mxu0 0
  %1508 = vmatprep.subr.bf16.mxu0 0
  %1509 = vmatpush2.bf16.msra.mxu0 0
  %1510 = vmatprep.subr.bf16.mxu0 0
  %1511 = vmatpush2.bf16.msra.mxu0 0
  %1512 = vmatprep.subr.bf16.mxu0 0
  %1513 = vmatpush2.bf16.msra.mxu0 0
  %1514 = vmatprep.subr.bf16.mxu0 0
  %1515 = vmatpush2.bf16.msra.mxu0 0
  %1516 = vmatprep.subr.bf16.mxu0 0
  %1517 = vmatpush2.bf16.msra.mxu0 0
  %1518 = vmatprep.subr.bf16.mxu0 0
  %1519 = vmatpush2.bf16.msra.mxu0 0
  %1520 = vmatprep.mubr.bf16.mxu0 0
  %1521 = vmatmul.mubr.bf16.gmra.mxu0 %v1486
  %v1522 = vpop.f32.mrf.mxu0
  %v1523 = vadd.f32 %v1459, %v1522
  %v1524 = vpop.f32.mrf.mxu0
  %v1525 = vpop.f32.mrf.mxu0
  %v1526 = vpop.f32.mrf.mxu0
  %1527 = vdwg.mxu0
  %1528 = vst [vmem:[%s13] sm:$0x3] %v1523
  // Predicated region
  $region54: #{qt_regressor_forward.1} parent=0 // pred_check
    _
  $region55: #{qt_regressor_forward.1} parent=0 // pred_check_branch
    %1530 = sbr.rel (0) target = $region57
  $region56: #{qt_regressor_forward.1} parent=0 // pred_region
    _
  $region57: #{qt_regressor_forward.1} parent=0 // pred_fallthru
    _
  // Predicated region
  $region58: #{qt_regressor_forward.1} parent=0 // pred_check
    _
  $region59: #{qt_regressor_forward.1} parent=0 // pred_check_branch
    %1532 = sbr.rel (0) target = $region61
  $region60: #{qt_regressor_forward.1} parent=0 // pred_region
    _
  $region61: #{qt_regressor_forward.1} parent=0 // pred_fallthru
    _

</llo_original>
